<compile_context>
chip_gen: v6e
topology: v6e:2x2x1
jax: 0.10.0
libtpu: 0.0.40
codegen_flags: <defaults>
</compile_context>

<pallas_src>
import functools

import numpy as np
import jax
import jax.numpy as jnp
from jax.experimental import pallas as pl
from jax.experimental.pallas import tpu as pltpu

NEG_SLOPE = 1.0 / 5.5  # F.leaky_relu(..., negative_slope=1/5.5)
HI = jax.lax.Precision.HIGHEST


def _oppaware_kernel(s_sm, srow_ref, s2_ref, o_ref,
                     w1i_ref, w1s_ref, b1i_ref, b1s_ref,
                     w2ti_ref, w2st_ref, b2i_ref, b2s_ref,
                     out_ref):
    f32 = jnp.float32
    srow = srow_ref[...]                                              # (1, LS0)

    # Effective biases on the MXU: b = b_init + (1,LS0) @ (LS0,LSn).
    b1 = b1i_ref[...] + jnp.dot(srow, b1s_ref[...].astype(f32),
                                preferred_element_type=f32)           # (1, LS1)
    b2 = b2i_ref[...] + jnp.dot(srow, b2s_ref[...].astype(f32),
                                preferred_element_type=f32)           # (1, LS2)

    # Layer 1:  h = s2 @ w1_init + o @ W1_flat + b1, where
    #   o[b, i*LS0+j]        = subs_params[i] * subs_params2[b, j]   (built in wrapper)
    #   W1_flat[i*LS0+j, k]  = w1_subspace[i, j, k]                  (flattened at rest)
    # so o @ W1_flat == s2 @ einsum('i,ijk->jk', subs_params, w1_subspace): the whole
    # subspace contraction is one lane-dense K=LS0*LS0 MXU matmul.
    h = (jnp.dot(s2_ref[...], w1i_ref[...], preferred_element_type=f32)
         + jnp.dot(o_ref[...], w1s_ref[...].astype(f32), preferred_element_type=f32)
         + b1)                                                        # (B, LS1)
    h = jnp.where(h >= 0, h, h * NEG_SLOPE)                           # leaky_relu

    # Layer 2: effective w2^T (lane dim = LS1 = 64, lane-dense) accumulated with
    # scalar broadcasts from SMEM; LS0 is tiny so this is a handful of vreg MACs.
    w2t = w2ti_ref[...]                                               # (LS2, LS1)
    for i in range(w2st_ref.shape[0]):
        w2t = w2t + s_sm[i] * w2st_ref[i].astype(f32)
    # out = h @ w2_eff + b2 == dot_general(h, w2_eff^T) contracting dim 1 with dim 1
    # (MXU takes the transposed RHS directly; no in-kernel transpose).
    out_ref[...] = jax.lax.dot_general(
        h, w2t, (((1,), (1,)), ((), ())), preferred_element_type=f32) + b2


def prepare_params(params, subspace_dtype=jnp.float32):
    """One-time, at-rest parameter layout for the kernel (casts / reshapes /
    transposes happen here, NOT per call)."""
    f32 = jnp.float32
    sd = subspace_dtype
    LS0, LS1 = params["w1_init"].shape
    LS2 = params["w2_init"].shape[1]
    return dict(
        w1_init=jnp.asarray(params["w1_init"], f32),                           # (LS0, LS1)
        w1s_flat=jnp.asarray(params["w1_subspace"], sd).reshape(LS0 * LS0, LS1),
        b1_init=jnp.asarray(params["b1_init"], f32).reshape(1, LS1),
        b1s=jnp.asarray(params["b1_subspace"], sd),                            # (LS0, LS1)
        w2t_init=jnp.asarray(params["w2_init"], f32).T,                        # (LS2, LS1)
        w2st=jnp.asarray(params["w2_subspace"], sd).transpose(0, 2, 1),        # (LS0, LS2, LS1)
        b2_init=jnp.asarray(params["b2_init"], f32).reshape(1, LS2),
        b2s=jnp.asarray(params["b2_subspace"], sd),                            # (LS0, LS2)
    )


@functools.partial(jax.jit, static_argnames=("batch_tile",))
def _oppaware_forward_jit(subs_params, subs_params2, prep, batch_tile):
    LS0, LS1 = prep["w1_init"].shape
    LS2 = prep["b2_init"].shape[1]

    s = jnp.asarray(subs_params, jnp.float32)
    s2 = jnp.asarray(subs_params2, jnp.float32)
    single = s2.ndim == 1
    if single:
        s2 = s2.reshape(1, LS0)
    B = s2.shape[0]

    use_grid = batch_tile is not None and B > batch_tile
    pad_to = batch_tile if use_grid else 8
    Bp = max(8, -(-B // pad_to) * pad_to)          # sublane / tile multiple
    if Bp != B:
        s2 = jnp.pad(s2, ((0, Bp - B), (0, 0)))

    srow = s.reshape(1, LS0)
    # Outer product for the layer-1 MXU reformulation (tiny, fused into this jit):
    # o[b, i*LS0 + j] = s[i] * s2[b, j].
    o = (s[None, :, None] * s2[:, None, :]).reshape(Bp, LS0 * LS0)

    args = (s, srow, s2, o,
            prep["w1_init"], prep["w1s_flat"], prep["b1_init"], prep["b1s"],
            prep["w2t_init"], prep["w2st"], prep["b2_init"], prep["b2s"])
    out_shape = jax.ShapeDtypeStruct((Bp, LS2), jnp.float32)

    if not use_grid:
        # Single invocation, whole operands resident in VMEM (<1.5 MiB working set):
        # no grid, no pipelining machinery, no double-buffering.
        vmem = pl.BlockSpec(memory_space=pltpu.MemorySpace.VMEM)
        smem = pl.BlockSpec(memory_space=pltpu.MemorySpace.SMEM)
        out = pl.pallas_call(
            _oppaware_kernel,
            out_shape=out_shape,
            in_specs=[smem] + [vmem] * 11,
            out_specs=vmem,
        )(*args)
    else:
        # Large batches: 1-D grid over batch tiles; parameters are grid-invariant
        # (block index 0 -> fetched once), subs_params rides along as a prefetched
        # SMEM scalar vector.  "parallel" lets v7x shard tiles across its 2 TCs.
        tb = batch_tile
        inv2 = lambda *_: (0, 0)
        inv3 = lambda *_: (0, 0, 0)
        row = lambda b, *_: (b, 0)
        grid_spec = pltpu.PrefetchScalarGridSpec(
            num_scalar_prefetch=1,
            grid=(Bp // tb,),
            in_specs=[
                pl.BlockSpec((1, LS0), inv2),                # srow
                pl.BlockSpec((tb, LS0), row),                # s2
                pl.BlockSpec((tb, LS0 * LS0), row),          # o
                pl.BlockSpec((LS0, LS1), inv2),              # w1_init
                pl.BlockSpec((LS0 * LS0, LS1), inv2),        # W1_flat
                pl.BlockSpec((1, LS1), inv2),                # b1_init
                pl.BlockSpec((LS0, LS1), inv2),              # b1_subspace
                pl.BlockSpec((LS2, LS1), inv2),              # w2_init^T
                pl.BlockSpec((LS0, LS2, LS1), inv3),         # w2_subspace^T
                pl.BlockSpec((1, LS2), inv2),                # b2_init
                pl.BlockSpec((LS0, LS2), inv2),              # b2_subspace
            ],
            out_specs=pl.BlockSpec((tb, LS2), row),
        )
        out = pl.pallas_call(
            _oppaware_kernel,
            out_shape=out_shape,
            grid_spec=grid_spec,
            compiler_params=pltpu.CompilerParams(
                dimension_semantics=("parallel",)),
        )(*args)

    out = out[:B]
    return out.reshape(-1) if single else out


def make_oppaware_forward(params, *, subspace_dtype=jnp.float32, batch_tile=None):
    """Prepare params once and return a jitted forward(subs_params, subs_params2).

    subs_params2 may be a single opponent vector (LS0,) — matching the module — or a
    batch (B, LS0) evaluated in one fused pallas_call.  subspace_dtype=jnp.bfloat16
    stores the four large subspace tensors bf16 at rest (≈half the HBM traffic of
    this DMA-bound kernel); accumulation stays f32.  batch_tile (a multiple of 8)
    enables the batch-tiled grid path for B > batch_tile.
    """
    if batch_tile is not None and batch_tile % 8 != 0:
        raise ValueError("batch_tile must be a multiple of 8")
    prep = prepare_params(params, subspace_dtype)

    def forward(subs_params, subs_params2):
        return _oppaware_forward_jit(subs_params, subs_params2, prep,
                                     batch_tile=batch_tile)
    return forward


def oppaware_forward_ref(subs_params, subs_params2, params):
    """Pure-JAX reference mirroring the PyTorch forward (single opponent)."""
    w1 = params["w1_init"] + jnp.einsum('i,ijk->jk', subs_params,
                                        params["w1_subspace"], precision=HI)
    b1 = params["b1_init"] + jnp.einsum('i,ij->j', subs_params,
                                        params["b1_subspace"], precision=HI)
    w2 = params["w2_init"] + jnp.einsum('i,ijk->jk', subs_params,
                                        params["w2_subspace"], precision=HI)
    b2 = params["b2_init"] + jnp.einsum('i,ij->j', subs_params,
                                        params["b2_subspace"], precision=HI)
    out = subs_params2.reshape(1, -1)
    out = jnp.dot(out, w1, precision=HI) + b1
    out = jnp.where(out >= 0, out, out * NEG_SLOPE)
    out = jnp.dot(out, w2, precision=HI) + b2
    return out.reshape(-1)


def init_params(key, layer_sizes=(32, 64, 32), init_std=0.1, biases=True):
    """Deterministic synthetic init matching the shapes in __init__.

    hp assumed: biases=True, layers_wo_bias=[], biases_init='normal', init_std=0.1.
    Subspaces ~ N(0, 1/exp_row_norm), exp_row_norm = sqrt(n_direct_params).
    """
    LS0, LS1, LS2 = layer_sizes
    n_direct = (LS0 + int(biases)) * LS1 + (LS1 + int(biases)) * LS2
    exp_row_norm = float(np.sqrt(n_direct))
    ks = jax.random.split(key, 10)
    params = {
        "w1_init": jax.random.normal(ks[0], (LS0, LS1), jnp.float32) * init_std,
        "b1_init": jax.random.normal(ks[1], (LS1,), jnp.float32) * init_std,
        "w2_init": jax.random.normal(ks[2], (LS1, LS2), jnp.float32) * init_std,
        "b2_init": jax.random.normal(ks[3], (LS2,), jnp.float32) * init_std,
        "w1_subspace": jax.random.normal(ks[4], (LS0, LS0, LS1), jnp.float32) / exp_row_norm,
        "b1_subspace": jax.random.normal(ks[5], (LS0, LS1), jnp.float32) / exp_row_norm,
        "w2_subspace": jax.random.normal(ks[6], (LS0, LS1, LS2), jnp.float32) / exp_row_norm,
        "b2_subspace": jax.random.normal(ks[7], (LS0, LS2), jnp.float32) / exp_row_norm,
    }
    return params, ks[8], ks[9]


if __name__ == "__main__":
    LS = (32, 64, 32)  # hp.layer_sizes; n_free_params = LS[0] = 32
    key = jax.random.PRNGKey(0)
    params, k_self, k_opp = init_params(key, LS)

    # self.subs_params is zero-initialized in __init__; use a deterministic nonzero
    # value so the subspace contraction path is exercised.
    subs_params = jax.random.normal(k_self, (LS[0],), jnp.float32) * 0.5
    B = 8
    subs2_batch = jax.random.normal(k_opp, (B, LS[0]), jnp.float32) * 0.5
    ref = jax.vmap(lambda s2: oppaware_forward_ref(subs_params, s2, params))(subs2_batch)

    # --- f32, no-grid path: 8 opponent forwards fused into one pallas_call ---
    fwd = make_oppaware_forward(params)
    out = jax.block_until_ready(fwd(subs_params, subs2_batch))
    if not bool(jnp.allclose(out, ref, rtol=1e-4, atol=1e-4)):
        raise AssertionError("batched f32 Pallas output mismatches JAX reference")

    # --- single-opponent path (exact module API: forward(net2) -> (LS2,)) ---
    out1 = jax.block_until_ready(fwd(subs_params, subs2_batch[0]))
    if not bool(jnp.allclose(out1, ref[0], rtol=1e-4, atol=1e-4)):
        raise AssertionError("single-opponent Pallas output mismatches JAX reference")

    # --- bf16-at-rest subspace tensors (half the HBM traffic), f32 accumulation ---
    fwd_bf16 = make_oppaware_forward(params, subspace_dtype=jnp.bfloat16)
    params_bf = dict(params)
    for name in ("w1_subspace", "b1_subspace", "w2_subspace", "b2_subspace"):
        params_bf[name] = params[name].astype(jnp.bfloat16).astype(jnp.float32)
    out_bf = jax.block_until_ready(fwd_bf16(subs_params, subs2_batch))
    ref_bf = jax.vmap(lambda s2: oppaware_forward_ref(subs_params, s2, params_bf))(subs2_batch)
    if not bool(jnp.allclose(out_bf, ref_bf, rtol=1e-3, atol=1e-3)):
        raise AssertionError("bf16-subspace Pallas output mismatches JAX reference")

    # --- larger batch via the batch-tiled grid path (parallel axis for v7x 2 TCs) ---
    fwd_grid = make_oppaware_forward(params, batch_tile=32)
    B2 = 64
    subs2_big = jax.random.normal(jax.random.PRNGKey(7), (B2, LS[0]), jnp.float32) * 0.5
    out_big = jax.block_until_ready(fwd_grid(subs_params, subs2_big))
    ref_big = jax.vmap(lambda s2: oppaware_forward_ref(subs_params, s2, params))(subs2_big)
    if not bool(jnp.allclose(out_big, ref_big, rtol=1e-4, atol=1e-4)):
        raise AssertionError("gridded Pallas output mismatches JAX reference")

    print("KERNEL_OK")
</pallas_src>

<mosaic_0001>
module attributes {stable_mosaic.version = 11 : i64} {
  func.func @_oppaware_kernel(%arg0: memref<32xf32, #tpu.memory_space<smem>>, %arg1: memref<1x32xf32, #tpu.memory_space<vmem>>, %arg2: memref<8x32xf32, #tpu.memory_space<vmem>>, %arg3: memref<8x1024xf32, #tpu.memory_space<vmem>>, %arg4: memref<32x64xf32, #tpu.memory_space<vmem>>, %arg5: memref<1024x64xf32, #tpu.memory_space<vmem>>, %arg6: memref<1x64xf32, #tpu.memory_space<vmem>>, %arg7: memref<32x64xf32, #tpu.memory_space<vmem>>, %arg8: memref<32x64xf32, #tpu.memory_space<vmem>>, %arg9: memref<32x32x64xf32, #tpu.memory_space<vmem>>, %arg10: memref<1x32xf32, #tpu.memory_space<vmem>>, %arg11: memref<32x32xf32, #tpu.memory_space<vmem>>, %arg12: memref<8x32xf32, #tpu.memory_space<vmem>>) attributes {dimension_semantics = [], scalar_prefetch = 0 : i64, scratch_operands = 0 : i64, tpu.core_type = #tpu.core_type<tc>} {
    %c0 = arith.constant 0 : index
    %c0_0 = arith.constant 0 : index
    %0 = vector.load %arg1[%c0, %c0_0] : memref<1x32xf32, #tpu.memory_space<vmem>>, vector<1x32xf32>
    %c0_1 = arith.constant 0 : index
    %c0_2 = arith.constant 0 : index
    %1 = vector.load %arg6[%c0_1, %c0_2] : memref<1x64xf32, #tpu.memory_space<vmem>>, vector<1x64xf32>
    %c0_3 = arith.constant 0 : index
    %c0_4 = arith.constant 0 : index
    %2 = vector.load %arg7[%c0_3, %c0_4] : memref<32x64xf32, #tpu.memory_space<vmem>>, vector<32x64xf32>
    %cst = arith.constant dense<0.000000e+00> : vector<1x64xf32>
    %3 = tpu.matmul %0, %2, %cst {dimension_numbers = #tpu.dot_dimension_numbers<[1], [0], [0], [1], [0, 0, 1, 1], [], []>} : vector<1x32xf32>, vector<32x64xf32>, vector<1x64xf32> -> vector<1x64xf32>
    %4 = arith.addf %1, %3 : vector<1x64xf32>
    %c0_5 = arith.constant 0 : index
    %c0_6 = arith.constant 0 : index
    %5 = vector.load %arg10[%c0_5, %c0_6] : memref<1x32xf32, #tpu.memory_space<vmem>>, vector<1x32xf32>
    %c0_7 = arith.constant 0 : index
    %c0_8 = arith.constant 0 : index
    %6 = vector.load %arg11[%c0_7, %c0_8] : memref<32x32xf32, #tpu.memory_space<vmem>>, vector<32x32xf32>
    %cst_9 = arith.constant dense<0.000000e+00> : vector<1x32xf32>
    %7 = tpu.matmul %0, %6, %cst_9 {dimension_numbers = #tpu.dot_dimension_numbers<[1], [0], [0], [1], [0, 0, 1, 1], [], []>} : vector<1x32xf32>, vector<32x32xf32>, vector<1x32xf32> -> vector<1x32xf32>
    %8 = arith.addf %5, %7 : vector<1x32xf32>
    %c0_10 = arith.constant 0 : index
    %c0_11 = arith.constant 0 : index
    %9 = vector.load %arg2[%c0_10, %c0_11] : memref<8x32xf32, #tpu.memory_space<vmem>>, vector<8x32xf32>
    %c0_12 = arith.constant 0 : index
    %c0_13 = arith.constant 0 : index
    %10 = vector.load %arg4[%c0_12, %c0_13] : memref<32x64xf32, #tpu.memory_space<vmem>>, vector<32x64xf32>
    %cst_14 = arith.constant dense<0.000000e+00> : vector<8x64xf32>
    %11 = tpu.matmul %9, %10, %cst_14 {dimension_numbers = #tpu.dot_dimension_numbers<[1], [0], [0], [1], [0, 0, 1, 1], [], []>} : vector<8x32xf32>, vector<32x64xf32>, vector<8x64xf32> -> vector<8x64xf32>
    %c0_15 = arith.constant 0 : index
    %c0_16 = arith.constant 0 : index
    %12 = vector.load %arg3[%c0_15, %c0_16] : memref<8x1024xf32, #tpu.memory_space<vmem>>, vector<8x1024xf32>
    %c0_17 = arith.constant 0 : index
    %c0_18 = arith.constant 0 : index
    %13 = vector.load %arg5[%c0_17, %c0_18] : memref<1024x64xf32, #tpu.memory_space<vmem>>, vector<1024x64xf32>
    %cst_19 = arith.constant dense<0.000000e+00> : vector<8x64xf32>
    %14 = tpu.matmul %12, %13, %cst_19 {dimension_numbers = #tpu.dot_dimension_numbers<[1], [0], [0], [1], [0, 0, 1, 1], [], []>} : vector<8x1024xf32>, vector<1024x64xf32>, vector<8x64xf32> -> vector<8x64xf32>
    %15 = arith.addf %11, %14 : vector<8x64xf32>
    %16 = vector.broadcast %4 : vector<1x64xf32> to vector<8x64xf32>
    %17 = arith.addf %15, %16 : vector<8x64xf32>
    %cst_20 = arith.constant 0.000000e+00 : f32
    %18 = vector.broadcast %cst_20 : f32 to vector<8x64xf32>
    %19 = arith.cmpf oge, %17, %18 : vector<8x64xf32>
    %cst_21 = arith.constant 0.181818187 : f32
    %20 = vector.broadcast %cst_21 : f32 to vector<8x64xf32>
    %21 = arith.mulf %17, %20 : vector<8x64xf32>
    %22 = arith.select %19, %17, %21 : vector<8x64xi1>, vector<8x64xf32>
    %c0_22 = arith.constant 0 : index
    %c0_23 = arith.constant 0 : index
    %23 = vector.load %arg8[%c0_22, %c0_23] : memref<32x64xf32, #tpu.memory_space<vmem>>, vector<32x64xf32>
    %c0_24 = arith.constant 0 : index
    %24 = memref.load %arg0[%c0_24] : memref<32xf32, #tpu.memory_space<smem>>
    %c0_25 = arith.constant 0 : index
    %c0_26 = arith.constant 0 : index
    %c0_27 = arith.constant 0 : index
    %25 = vector.load %arg9[%c0_25, %c0_26, %c0_27] : memref<32x32x64xf32, #tpu.memory_space<vmem>>, vector<1x32x64xf32>
    %26 = vector.shape_cast %25 : vector<1x32x64xf32> to vector<32x64xf32>
    %27 = vector.broadcast %24 : f32 to vector<32x64xf32>
    %28 = arith.mulf %27, %26 : vector<32x64xf32>
    %29 = arith.addf %23, %28 : vector<32x64xf32>
    %c1 = arith.constant 1 : index
    %30 = memref.load %arg0[%c1] : memref<32xf32, #tpu.memory_space<smem>>
    %c1_28 = arith.constant 1 : index
    %c0_29 = arith.constant 0 : index
    %c0_30 = arith.constant 0 : index
    %31 = vector.load %arg9[%c1_28, %c0_29, %c0_30] : memref<32x32x64xf32, #tpu.memory_space<vmem>>, vector<1x32x64xf32>
    %32 = vector.shape_cast %31 : vector<1x32x64xf32> to vector<32x64xf32>
    %33 = vector.broadcast %30 : f32 to vector<32x64xf32>
    %34 = arith.mulf %33, %32 : vector<32x64xf32>
    %35 = arith.addf %29, %34 : vector<32x64xf32>
    %c2 = arith.constant 2 : index
    %36 = memref.load %arg0[%c2] : memref<32xf32, #tpu.memory_space<smem>>
    %c2_31 = arith.constant 2 : index
    %c0_32 = arith.constant 0 : index
    %c0_33 = arith.constant 0 : index
    %37 = vector.load %arg9[%c2_31, %c0_32, %c0_33] : memref<32x32x64xf32, #tpu.memory_space<vmem>>, vector<1x32x64xf32>
    %38 = vector.shape_cast %37 : vector<1x32x64xf32> to vector<32x64xf32>
    %39 = vector.broadcast %36 : f32 to vector<32x64xf32>
    %40 = arith.mulf %39, %38 : vector<32x64xf32>
    %41 = arith.addf %35, %40 : vector<32x64xf32>
    %c3 = arith.constant 3 : index
    %42 = memref.load %arg0[%c3] : memref<32xf32, #tpu.memory_space<smem>>
    %c3_34 = arith.constant 3 : index
    %c0_35 = arith.constant 0 : index
    %c0_36 = arith.constant 0 : index
    %43 = vector.load %arg9[%c3_34, %c0_35, %c0_36] : memref<32x32x64xf32, #tpu.memory_space<vmem>>, vector<1x32x64xf32>
    %44 = vector.shape_cast %43 : vector<1x32x64xf32> to vector<32x64xf32>
    %45 = vector.broadcast %42 : f32 to vector<32x64xf32>
    %46 = arith.mulf %45, %44 : vector<32x64xf32>
    %47 = arith.addf %41, %46 : vector<32x64xf32>
    %c4 = arith.constant 4 : index
    %48 = memref.load %arg0[%c4] : memref<32xf32, #tpu.memory_space<smem>>
    %c4_37 = arith.constant 4 : index
    %c0_38 = arith.constant 0 : index
    %c0_39 = arith.constant 0 : index
    %49 = vector.load %arg9[%c4_37, %c0_38, %c0_39] : memref<32x32x64xf32, #tpu.memory_space<vmem>>, vector<1x32x64xf32>
    %50 = vector.shape_cast %49 : vector<1x32x64xf32> to vector<32x64xf32>
    %51 = vector.broadcast %48 : f32 to vector<32x64xf32>
    %52 = arith.mulf %51, %50 : vector<32x64xf32>
    %53 = arith.addf %47, %52 : vector<32x64xf32>
    %c5 = arith.constant 5 : index
    %54 = memref.load %arg0[%c5] : memref<32xf32, #tpu.memory_space<smem>>
    %c5_40 = arith.constant 5 : index
    %c0_41 = arith.constant 0 : index
    %c0_42 = arith.constant 0 : index
    %55 = vector.load %arg9[%c5_40, %c0_41, %c0_42] : memref<32x32x64xf32, #tpu.memory_space<vmem>>, vector<1x32x64xf32>
    %56 = vector.shape_cast %55 : vector<1x32x64xf32> to vector<32x64xf32>
    %57 = vector.broadcast %54 : f32 to vector<32x64xf32>
    %58 = arith.mulf %57, %56 : vector<32x64xf32>
    %59 = arith.addf %53, %58 : vector<32x64xf32>
    %c6 = arith.constant 6 : index
    %60 = memref.load %arg0[%c6] : memref<32xf32, #tpu.memory_space<smem>>
    %c6_43 = arith.constant 6 : index
    %c0_44 = arith.constant 0 : index
    %c0_45 = arith.constant 0 : index
    %61 = vector.load %arg9[%c6_43, %c0_44, %c0_45] : memref<32x32x64xf32, #tpu.memory_space<vmem>>, vector<1x32x64xf32>
    %62 = vector.shape_cast %61 : vector<1x32x64xf32> to vector<32x64xf32>
    %63 = vector.broadcast %60 : f32 to vector<32x64xf32>
    %64 = arith.mulf %63, %62 : vector<32x64xf32>
    %65 = arith.addf %59, %64 : vector<32x64xf32>
    %c7 = arith.constant 7 : index
    %66 = memref.load %arg0[%c7] : memref<32xf32, #tpu.memory_space<smem>>
    %c7_46 = arith.constant 7 : index
    %c0_47 = arith.constant 0 : index
    %c0_48 = arith.constant 0 : index
    %67 = vector.load %arg9[%c7_46, %c0_47, %c0_48] : memref<32x32x64xf32, #tpu.memory_space<vmem>>, vector<1x32x64xf32>
    %68 = vector.shape_cast %67 : vector<1x32x64xf32> to vector<32x64xf32>
    %69 = vector.broadcast %66 : f32 to vector<32x64xf32>
    %70 = arith.mulf %69, %68 : vector<32x64xf32>
    %71 = arith.addf %65, %70 : vector<32x64xf32>
    %c8 = arith.constant 8 : index
    %72 = memref.load %arg0[%c8] : memref<32xf32, #tpu.memory_space<smem>>
    %c8_49 = arith.constant 8 : index
    %c0_50 = arith.constant 0 : index
    %c0_51 = arith.constant 0 : index
    %73 = vector.load %arg9[%c8_49, %c0_50, %c0_51] : memref<32x32x64xf32, #tpu.memory_space<vmem>>, vector<1x32x64xf32>
    %74 = vector.shape_cast %73 : vector<1x32x64xf32> to vector<32x64xf32>
    %75 = vector.broadcast %72 : f32 to vector<32x64xf32>
    %76 = arith.mulf %75, %74 : vector<32x64xf32>
    %77 = arith.addf %71, %76 : vector<32x64xf32>
    %c9 = arith.constant 9 : index
    %78 = memref.load %arg0[%c9] : memref<32xf32, #tpu.memory_space<smem>>
    %c9_52 = arith.constant 9 : index
    %c0_53 = arith.constant 0 : index
    %c0_54 = arith.constant 0 : index
    %79 = vector.load %arg9[%c9_52, %c0_53, %c0_54] : memref<32x32x64xf32, #tpu.memory_space<vmem>>, vector<1x32x64xf32>
    %80 = vector.shape_cast %79 : vector<1x32x64xf32> to vector<32x64xf32>
    %81 = vector.broadcast %78 : f32 to vector<32x64xf32>
    %82 = arith.mulf %81, %80 : vector<32x64xf32>
    %83 = arith.addf %77, %82 : vector<32x64xf32>
    %c10 = arith.constant 10 : index
    %84 = memref.load %arg0[%c10] : memref<32xf32, #tpu.memory_space<smem>>
    %c10_55 = arith.constant 10 : index
    %c0_56 = arith.constant 0 : index
    %c0_57 = arith.constant 0 : index
    %85 = vector.load %arg9[%c10_55, %c0_56, %c0_57] : memref<32x32x64xf32, #tpu.memory_space<vmem>>, vector<1x32x64xf32>
    %86 = vector.shape_cast %85 : vector<1x32x64xf32> to vector<32x64xf32>
    %87 = vector.broadcast %84 : f32 to vector<32x64xf32>
    %88 = arith.mulf %87, %86 : vector<32x64xf32>
    %89 = arith.addf %83, %88 : vector<32x64xf32>
    %c11 = arith.constant 11 : index
    %90 = memref.load %arg0[%c11] : memref<32xf32, #tpu.memory_space<smem>>
    %c11_58 = arith.constant 11 : index
    %c0_59 = arith.constant 0 : index
    %c0_60 = arith.constant 0 : index
    %91 = vector.load %arg9[%c11_58, %c0_59, %c0_60] : memref<32x32x64xf32, #tpu.memory_space<vmem>>, vector<1x32x64xf32>
    %92 = vector.shape_cast %91 : vector<1x32x64xf32> to vector<32x64xf32>
    %93 = vector.broadcast %90 : f32 to vector<32x64xf32>
    %94 = arith.mulf %93, %92 : vector<32x64xf32>
    %95 = arith.addf %89, %94 : vector<32x64xf32>
    %c12 = arith.constant 12 : index
    %96 = memref.load %arg0[%c12] : memref<32xf32, #tpu.memory_space<smem>>
    %c12_61 = arith.constant 12 : index
    %c0_62 = arith.constant 0 : index
    %c0_63 = arith.constant 0 : index
    %97 = vector.load %arg9[%c12_61, %c0_62, %c0_63] : memref<32x32x64xf32, #tpu.memory_space<vmem>>, vector<1x32x64xf32>
    %98 = vector.shape_cast %97 : vector<1x32x64xf32> to vector<32x64xf32>
    %99 = vector.broadcast %96 : f32 to vector<32x64xf32>
    %100 = arith.mulf %99, %98 : vector<32x64xf32>
    %101 = arith.addf %95, %100 : vector<32x64xf32>
    %c13 = arith.constant 13 : index
    %102 = memref.load %arg0[%c13] : memref<32xf32, #tpu.memory_space<smem>>
    %c13_64 = arith.constant 13 : index
    %c0_65 = arith.constant 0 : index
    %c0_66 = arith.constant 0 : index
    %103 = vector.load %arg9[%c13_64, %c0_65, %c0_66] : memref<32x32x64xf32, #tpu.memory_space<vmem>>, vector<1x32x64xf32>
    %104 = vector.shape_cast %103 : vector<1x32x64xf32> to vector<32x64xf32>
    %105 = vector.broadcast %102 : f32 to vector<32x64xf32>
    %106 = arith.mulf %105, %104 : vector<32x64xf32>
    %107 = arith.addf %101, %106 : vector<32x64xf32>
    %c14 = arith.constant 14 : index
    %108 = memref.load %arg0[%c14] : memref<32xf32, #tpu.memory_space<smem>>
    %c14_67 = arith.constant 14 : index
    %c0_68 = arith.constant 0 : index
    %c0_69 = arith.constant 0 : index
    %109 = vector.load %arg9[%c14_67, %c0_68, %c0_69] : memref<32x32x64xf32, #tpu.memory_space<vmem>>, vector<1x32x64xf32>
    %110 = vector.shape_cast %109 : vector<1x32x64xf32> to vector<32x64xf32>
    %111 = vector.broadcast %108 : f32 to vector<32x64xf32>
    %112 = arith.mulf %111, %110 : vector<32x64xf32>
    %113 = arith.addf %107, %112 : vector<32x64xf32>
    %c15 = arith.constant 15 : index
    %114 = memref.load %arg0[%c15] : memref<32xf32, #tpu.memory_space<smem>>
    %c15_70 = arith.constant 15 : index
    %c0_71 = arith.constant 0 : index
    %c0_72 = arith.constant 0 : index
    %115 = vector.load %arg9[%c15_70, %c0_71, %c0_72] : memref<32x32x64xf32, #tpu.memory_space<vmem>>, vector<1x32x64xf32>
    %116 = vector.shape_cast %115 : vector<1x32x64xf32> to vector<32x64xf32>
    %117 = vector.broadcast %114 : f32 to vector<32x64xf32>
    %118 = arith.mulf %117, %116 : vector<32x64xf32>
    %119 = arith.addf %113, %118 : vector<32x64xf32>
    %c16 = arith.constant 16 : index
    %120 = memref.load %arg0[%c16] : memref<32xf32, #tpu.memory_space<smem>>
    %c16_73 = arith.constant 16 : index
    %c0_74 = arith.constant 0 : index
    %c0_75 = arith.constant 0 : index
    %121 = vector.load %arg9[%c16_73, %c0_74, %c0_75] : memref<32x32x64xf32, #tpu.memory_space<vmem>>, vector<1x32x64xf32>
    %122 = vector.shape_cast %121 : vector<1x32x64xf32> to vector<32x64xf32>
    %123 = vector.broadcast %120 : f32 to vector<32x64xf32>
    %124 = arith.mulf %123, %122 : vector<32x64xf32>
    %125 = arith.addf %119, %124 : vector<32x64xf32>
    %c17 = arith.constant 17 : index
    %126 = memref.load %arg0[%c17] : memref<32xf32, #tpu.memory_space<smem>>
    %c17_76 = arith.constant 17 : index
    %c0_77 = arith.constant 0 : index
    %c0_78 = arith.constant 0 : index
    %127 = vector.load %arg9[%c17_76, %c0_77, %c0_78] : memref<32x32x64xf32, #tpu.memory_space<vmem>>, vector<1x32x64xf32>
    %128 = vector.shape_cast %127 : vector<1x32x64xf32> to vector<32x64xf32>
    %129 = vector.broadcast %126 : f32 to vector<32x64xf32>
    %130 = arith.mulf %129, %128 : vector<32x64xf32>
    %131 = arith.addf %125, %130 : vector<32x64xf32>
    %c18 = arith.constant 18 : index
    %132 = memref.load %arg0[%c18] : memref<32xf32, #tpu.memory_space<smem>>
    %c18_79 = arith.constant 18 : index
    %c0_80 = arith.constant 0 : index
    %c0_81 = arith.constant 0 : index
    %133 = vector.load %arg9[%c18_79, %c0_80, %c0_81] : memref<32x32x64xf32, #tpu.memory_space<vmem>>, vector<1x32x64xf32>
    %134 = vector.shape_cast %133 : vector<1x32x64xf32> to vector<32x64xf32>
    %135 = vector.broadcast %132 : f32 to vector<32x64xf32>
    %136 = arith.mulf %135, %134 : vector<32x64xf32>
    %137 = arith.addf %131, %136 : vector<32x64xf32>
    %c19 = arith.constant 19 : index
    %138 = memref.load %arg0[%c19] : memref<32xf32, #tpu.memory_space<smem>>
    %c19_82 = arith.constant 19 : index
    %c0_83 = arith.constant 0 : index
    %c0_84 = arith.constant 0 : index
    %139 = vector.load %arg9[%c19_82, %c0_83, %c0_84] : memref<32x32x64xf32, #tpu.memory_space<vmem>>, vector<1x32x64xf32>
    %140 = vector.shape_cast %139 : vector<1x32x64xf32> to vector<32x64xf32>
    %141 = vector.broadcast %138 : f32 to vector<32x64xf32>
    %142 = arith.mulf %141, %140 : vector<32x64xf32>
    %143 = arith.addf %137, %142 : vector<32x64xf32>
    %c20 = arith.constant 20 : index
    %144 = memref.load %arg0[%c20] : memref<32xf32, #tpu.memory_space<smem>>
    %c20_85 = arith.constant 20 : index
    %c0_86 = arith.constant 0 : index
    %c0_87 = arith.constant 0 : index
    %145 = vector.load %arg9[%c20_85, %c0_86, %c0_87] : memref<32x32x64xf32, #tpu.memory_space<vmem>>, vector<1x32x64xf32>
    %146 = vector.shape_cast %145 : vector<1x32x64xf32> to vector<32x64xf32>
    %147 = vector.broadcast %144 : f32 to vector<32x64xf32>
    %148 = arith.mulf %147, %146 : vector<32x64xf32>
    %149 = arith.addf %143, %148 : vector<32x64xf32>
    %c21 = arith.constant 21 : index
    %150 = memref.load %arg0[%c21] : memref<32xf32, #tpu.memory_space<smem>>
    %c21_88 = arith.constant 21 : index
    %c0_89 = arith.constant 0 : index
    %c0_90 = arith.constant 0 : index
    %151 = vector.load %arg9[%c21_88, %c0_89, %c0_90] : memref<32x32x64xf32, #tpu.memory_space<vmem>>, vector<1x32x64xf32>
    %152 = vector.shape_cast %151 : vector<1x32x64xf32> to vector<32x64xf32>
    %153 = vector.broadcast %150 : f32 to vector<32x64xf32>
    %154 = arith.mulf %153, %152 : vector<32x64xf32>
    %155 = arith.addf %149, %154 : vector<32x64xf32>
    %c22 = arith.constant 22 : index
    %156 = memref.load %arg0[%c22] : memref<32xf32, #tpu.memory_space<smem>>
    %c22_91 = arith.constant 22 : index
    %c0_92 = arith.constant 0 : index
    %c0_93 = arith.constant 0 : index
    %157 = vector.load %arg9[%c22_91, %c0_92, %c0_93] : memref<32x32x64xf32, #tpu.memory_space<vmem>>, vector<1x32x64xf32>
    %158 = vector.shape_cast %157 : vector<1x32x64xf32> to vector<32x64xf32>
    %159 = vector.broadcast %156 : f32 to vector<32x64xf32>
    %160 = arith.mulf %159, %158 : vector<32x64xf32>
    %161 = arith.addf %155, %160 : vector<32x64xf32>
    %c23 = arith.constant 23 : index
    %162 = memref.load %arg0[%c23] : memref<32xf32, #tpu.memory_space<smem>>
    %c23_94 = arith.constant 23 : index
    %c0_95 = arith.constant 0 : index
    %c0_96 = arith.constant 0 : index
    %163 = vector.load %arg9[%c23_94, %c0_95, %c0_96] : memref<32x32x64xf32, #tpu.memory_space<vmem>>, vector<1x32x64xf32>
    %164 = vector.shape_cast %163 : vector<1x32x64xf32> to vector<32x64xf32>
    %165 = vector.broadcast %162 : f32 to vector<32x64xf32>
    %166 = arith.mulf %165, %164 : vector<32x64xf32>
    %167 = arith.addf %161, %166 : vector<32x64xf32>
    %c24 = arith.constant 24 : index
    %168 = memref.load %arg0[%c24] : memref<32xf32, #tpu.memory_space<smem>>
    %c24_97 = arith.constant 24 : index
    %c0_98 = arith.constant 0 : index
    %c0_99 = arith.constant 0 : index
    %169 = vector.load %arg9[%c24_97, %c0_98, %c0_99] : memref<32x32x64xf32, #tpu.memory_space<vmem>>, vector<1x32x64xf32>
    %170 = vector.shape_cast %169 : vector<1x32x64xf32> to vector<32x64xf32>
    %171 = vector.broadcast %168 : f32 to vector<32x64xf32>
    %172 = arith.mulf %171, %170 : vector<32x64xf32>
    %173 = arith.addf %167, %172 : vector<32x64xf32>
    %c25 = arith.constant 25 : index
    %174 = memref.load %arg0[%c25] : memref<32xf32, #tpu.memory_space<smem>>
    %c25_100 = arith.constant 25 : index
    %c0_101 = arith.constant 0 : index
    %c0_102 = arith.constant 0 : index
    %175 = vector.load %arg9[%c25_100, %c0_101, %c0_102] : memref<32x32x64xf32, #tpu.memory_space<vmem>>, vector<1x32x64xf32>
    %176 = vector.shape_cast %175 : vector<1x32x64xf32> to vector<32x64xf32>
    %177 = vector.broadcast %174 : f32 to vector<32x64xf32>
    %178 = arith.mulf %177, %176 : vector<32x64xf32>
    %179 = arith.addf %173, %178 : vector<32x64xf32>
    %c26 = arith.constant 26 : index
    %180 = memref.load %arg0[%c26] : memref<32xf32, #tpu.memory_space<smem>>
    %c26_103 = arith.constant 26 : index
    %c0_104 = arith.constant 0 : index
    %c0_105 = arith.constant 0 : index
    %181 = vector.load %arg9[%c26_103, %c0_104, %c0_105] : memref<32x32x64xf32, #tpu.memory_space<vmem>>, vector<1x32x64xf32>
    %182 = vector.shape_cast %181 : vector<1x32x64xf32> to vector<32x64xf32>
    %183 = vector.broadcast %180 : f32 to vector<32x64xf32>
    %184 = arith.mulf %183, %182 : vector<32x64xf32>
    %185 = arith.addf %179, %184 : vector<32x64xf32>
    %c27 = arith.constant 27 : index
    %186 = memref.load %arg0[%c27] : memref<32xf32, #tpu.memory_space<smem>>
    %c27_106 = arith.constant 27 : index
    %c0_107 = arith.constant 0 : index
    %c0_108 = arith.constant 0 : index
    %187 = vector.load %arg9[%c27_106, %c0_107, %c0_108] : memref<32x32x64xf32, #tpu.memory_space<vmem>>, vector<1x32x64xf32>
    %188 = vector.shape_cast %187 : vector<1x32x64xf32> to vector<32x64xf32>
    %189 = vector.broadcast %186 : f32 to vector<32x64xf32>
    %190 = arith.mulf %189, %188 : vector<32x64xf32>
    %191 = arith.addf %185, %190 : vector<32x64xf32>
    %c28 = arith.constant 28 : index
    %192 = memref.load %arg0[%c28] : memref<32xf32, #tpu.memory_space<smem>>
    %c28_109 = arith.constant 28 : index
    %c0_110 = arith.constant 0 : index
    %c0_111 = arith.constant 0 : index
    %193 = vector.load %arg9[%c28_109, %c0_110, %c0_111] : memref<32x32x64xf32, #tpu.memory_space<vmem>>, vector<1x32x64xf32>
    %194 = vector.shape_cast %193 : vector<1x32x64xf32> to vector<32x64xf32>
    %195 = vector.broadcast %192 : f32 to vector<32x64xf32>
    %196 = arith.mulf %195, %194 : vector<32x64xf32>
    %197 = arith.addf %191, %196 : vector<32x64xf32>
    %c29 = arith.constant 29 : index
    %198 = memref.load %arg0[%c29] : memref<32xf32, #tpu.memory_space<smem>>
    %c29_112 = arith.constant 29 : index
    %c0_113 = arith.constant 0 : index
    %c0_114 = arith.constant 0 : index
    %199 = vector.load %arg9[%c29_112, %c0_113, %c0_114] : memref<32x32x64xf32, #tpu.memory_space<vmem>>, vector<1x32x64xf32>
    %200 = vector.shape_cast %199 : vector<1x32x64xf32> to vector<32x64xf32>
    %201 = vector.broadcast %198 : f32 to vector<32x64xf32>
    %202 = arith.mulf %201, %200 : vector<32x64xf32>
    %203 = arith.addf %197, %202 : vector<32x64xf32>
    %c30 = arith.constant 30 : index
    %204 = memref.load %arg0[%c30] : memref<32xf32, #tpu.memory_space<smem>>
    %c30_115 = arith.constant 30 : index
    %c0_116 = arith.constant 0 : index
    %c0_117 = arith.constant 0 : index
    %205 = vector.load %arg9[%c30_115, %c0_116, %c0_117] : memref<32x32x64xf32, #tpu.memory_space<vmem>>, vector<1x32x64xf32>
    %206 = vector.shape_cast %205 : vector<1x32x64xf32> to vector<32x64xf32>
    %207 = vector.broadcast %204 : f32 to vector<32x64xf32>
    %208 = arith.mulf %207, %206 : vector<32x64xf32>
    %209 = arith.addf %203, %208 : vector<32x64xf32>
    %c31 = arith.constant 31 : index
    %210 = memref.load %arg0[%c31] : memref<32xf32, #tpu.memory_space<smem>>
    %c31_118 = arith.constant 31 : index
    %c0_119 = arith.constant 0 : index
    %c0_120 = arith.constant 0 : index
    %211 = vector.load %arg9[%c31_118, %c0_119, %c0_120] : memref<32x32x64xf32, #tpu.memory_space<vmem>>, vector<1x32x64xf32>
    %212 = vector.shape_cast %211 : vector<1x32x64xf32> to vector<32x64xf32>
    %213 = vector.broadcast %210 : f32 to vector<32x64xf32>
    %214 = arith.mulf %213, %212 : vector<32x64xf32>
    %215 = arith.addf %209, %214 : vector<32x64xf32>
    %cst_121 = arith.constant dense<0.000000e+00> : vector<8x32xf32>
    %216 = tpu.matmul %22, %215, %cst_121 {dimension_numbers = #tpu.dot_dimension_numbers<[1], [1], [0], [0], [0, 0, 1, 0], [], []>} : vector<8x64xf32>, vector<32x64xf32>, vector<8x32xf32> -> vector<8x32xf32>
    %217 = vector.broadcast %8 : vector<1x32xf32> to vector<8x32xf32>
    %218 = arith.addf %216, %217 : vector<8x32xf32>
    %c0_122 = arith.constant 0 : index
    %c0_123 = arith.constant 0 : index
    %219 = vector.load %arg12[%c0_122, %c0_123] : memref<8x32xf32, #tpu.memory_space<vmem>>, vector<8x32xf32>
    tpu.vector_store %arg12[%c0_122, %c0_123], %218 {strides = array<i32>} : memref<8x32xf32, #tpu.memory_space<vmem>>, vector<8x32xf32>,
    return
  }
}

</mosaic_0001>

<llo_original>
// kernel: _oppaware_forward_jit.1
$region0: #{_oppaware_forward_jit.1}
  #allocation0 [shape = 'u32[]', space=smem, size = 0x4, offset = 0x4, fixed_abs, tag = 'smem constant byte address 0x4 - core index']
  #allocation1 [shape = 'u32[144,128]{1,0:T(1,128)}', space=vmem, size = 0x12000, scoped, tag = 'internal scratch']
  %s0 = inlined_call_operand.vmem [shape: f32[32], index: 0, kind: input, shape index: {}, may-alias: {0,1}]
  %s1 = inlined_call_operand.vmem [shape: f32[1,32], index: 1, kind: input, shape index: {}, may-alias: {0,1}]
  %s2 = inlined_call_operand.vmem [shape: f32[8,32], index: 2, kind: input, shape index: {}]
  %s3 = inlined_call_operand.vmem [shape: f32[8,1024], index: 3, kind: input, shape index: {}]
  %s4 = inlined_call_operand.vmem [shape: f32[32,64], index: 4, kind: input, shape index: {}]
  %s5 = inlined_call_operand.vmem [shape: f32[1024,64], index: 5, kind: input, shape index: {}]
  %s6 = inlined_call_operand.vmem [shape: f32[1,64], index: 6, kind: input, shape index: {}]
  %s7 = inlined_call_operand.vmem [shape: f32[32,64], index: 7, kind: input, shape index: {}]
  %s8 = inlined_call_operand.vmem [shape: f32[32,64], index: 8, kind: input, shape index: {}]
  %s9 = inlined_call_operand.vmem [shape: f32[32,32,64], index: 9, kind: input, shape index: {}]
  %s10 = inlined_call_operand.vmem [shape: f32[1,32], index: 10, kind: input, shape index: {}]
  %s11 = inlined_call_operand.vmem [shape: f32[32,32], index: 11, kind: input, shape index: {}]
  %s12 = inlined_call_operand.hbm [shape: f32[8,32], index: 12, kind: output, shape index: {}]
  %s13 = sld [smem:[#allocation0]]
  $region62: #{_oppaware_forward_jit.1} parent=0
    _
  %s15 = ssub.s32 1, %s13
  %s16 = scalar_select 0, %s15, %s13
  $region1: #{_oppaware_forward_jit.1} parent=0
    #allocation2 [shape = 'u8[512]{0}', space=smem, size = 0x200, scoped, tag = 'input window, operand 0, single buffered']
    #allocation3 [shape = 's32[1]{0}', space=sflag, size = 0x4, scoped, tag = 'scoped memory for _oppaware_forward_jit.1']
    #allocation4 [shape = 's32[1]{0}', space=sflag, size = 0x4, scoped, tag = 'scoped memory for _oppaware_forward_jit.1']
    #allocation5 [shape = 'u8[4096]{0}', space=vmem, size = 0x1000, scoped, tag = 'output window, operand 0, single buffered']
    %17 = vsyncpa [#allocation4], 0
    %18 = vsyncpa [#allocation3], 0
    // Predicated region
    $region2: #{_oppaware_forward_jit.1} parent=1 // pred_check
      _
    $region3: #{_oppaware_forward_jit.1} parent=1 // pred_check_branch
      %20 = sbr.rel (0) target = $region5
    $region4: #{_oppaware_forward_jit.1} parent=1 // pred_region
      %s22 = ssub.s32 16, 16
      %23 = vsyncadd [#allocation4], %s22
      %s25 = sshll.u32 %s0, 4
      %s26 = int_to_ptr.vmem [resolvable:$true] %s25
      %28 = dma.vmem_to_smem %s26, 16, [#allocation2], [#allocation4]
    $region5: #{_oppaware_forward_jit.1} parent=1 // pred_fallthru
      _
    // Predicated region
    $region6: #{_oppaware_forward_jit.1} parent=1 // pred_check
      _
    $region7: #{_oppaware_forward_jit.1} parent=1 // pred_check_branch
      %30 = sbr.rel (0) target = $region9
    $region8: #{_oppaware_forward_jit.1} parent=1 // pred_region
      _
    $region9: #{_oppaware_forward_jit.1} parent=1 // pred_fallthru
      _
    // Predicated region
    $region10: #{_oppaware_forward_jit.1} parent=1 // pred_check
      _
    $region11: #{_oppaware_forward_jit.1} parent=1 // pred_check_branch
      %32 = sbr.rel (0) target = $region13
    $region12: #{_oppaware_forward_jit.1} parent=1 // pred_region
      _
    $region13: #{_oppaware_forward_jit.1} parent=1 // pred_fallthru
      _
    // Predicated region
    $region14: #{_oppaware_forward_jit.1} parent=1 // pred_check
      _
    $region15: #{_oppaware_forward_jit.1} parent=1 // pred_check_branch
      %34 = sbr.rel (0) target = $region17
    $region16: #{_oppaware_forward_jit.1} parent=1 // pred_region
      _
    $region17: #{_oppaware_forward_jit.1} parent=1 // pred_fallthru
      _
    // Predicated region
    $region18: #{_oppaware_forward_jit.1} parent=1 // pred_check
      _
    $region19: #{_oppaware_forward_jit.1} parent=1 // pred_check_branch
      %36 = sbr.rel (0) target = $region21
    $region20: #{_oppaware_forward_jit.1} parent=1 // pred_region
      _
    $region21: #{_oppaware_forward_jit.1} parent=1 // pred_fallthru
      _
    // Predicated region
    $region22: #{_oppaware_forward_jit.1} parent=1 // pred_check
      _
    $region23: #{_oppaware_forward_jit.1} parent=1 // pred_check_branch
      %38 = sbr.rel (0) target = $region25
    $region24: #{_oppaware_forward_jit.1} parent=1 // pred_region
      _
    $region25: #{_oppaware_forward_jit.1} parent=1 // pred_fallthru
      _
    // Predicated region
    $region26: #{_oppaware_forward_jit.1} parent=1 // pred_check
      _
    $region27: #{_oppaware_forward_jit.1} parent=1 // pred_check_branch
      %40 = sbr.rel (0) target = $region29
    $region28: #{_oppaware_forward_jit.1} parent=1 // pred_region
      _
    $region29: #{_oppaware_forward_jit.1} parent=1 // pred_fallthru
      _
    // Predicated region
    $region30: #{_oppaware_forward_jit.1} parent=1 // pred_check
      _
    $region31: #{_oppaware_forward_jit.1} parent=1 // pred_check_branch
      %42 = sbr.rel (0) target = $region33
    $region32: #{_oppaware_forward_jit.1} parent=1 // pred_region
      _
    $region33: #{_oppaware_forward_jit.1} parent=1 // pred_fallthru
      _
    // Predicated region
    $region34: #{_oppaware_forward_jit.1} parent=1 // pred_check
      _
    $region35: #{_oppaware_forward_jit.1} parent=1 // pred_check_branch
      %44 = sbr.rel (0) target = $region37
    $region36: #{_oppaware_forward_jit.1} parent=1 // pred_region
      _
    $region37: #{_oppaware_forward_jit.1} parent=1 // pred_fallthru
      _
    // Predicated region
    $region38: #{_oppaware_forward_jit.1} parent=1 // pred_check
      _
    $region39: #{_oppaware_forward_jit.1} parent=1 // pred_check_branch
      %46 = sbr.rel (0) target = $region41
    $region40: #{_oppaware_forward_jit.1} parent=1 // pred_region
      _
    $region41: #{_oppaware_forward_jit.1} parent=1 // pred_fallthru
      _
    // Predicated region
    $region42: #{_oppaware_forward_jit.1} parent=1 // pred_check
      _
    $region43: #{_oppaware_forward_jit.1} parent=1 // pred_check_branch
      %48 = sbr.rel (0) target = $region45
    $region44: #{_oppaware_forward_jit.1} parent=1 // pred_region
      _
    $region45: #{_oppaware_forward_jit.1} parent=1 // pred_fallthru
      _
    // Predicated region
    $region46: #{_oppaware_forward_jit.1} parent=1 // pred_check
      _
    $region47: #{_oppaware_forward_jit.1} parent=1 // pred_check_branch
      %50 = sbr.rel (0) target = $region49
    $region48: #{_oppaware_forward_jit.1} parent=1 // pred_region
      _
    $region49: #{_oppaware_forward_jit.1} parent=1 // pred_fallthru
      _
    // Predicated region
    $region50: #{_oppaware_forward_jit.1} parent=1 // pred_check
      _
    $region51: #{_oppaware_forward_jit.1} parent=1 // pred_check_branch
      %52 = sbr.rel (0) target = $region53
    $region52: #{_oppaware_forward_jit.1} parent=1 // pred_region
      %53 = dma.done [#allocation4], 16
    $region53: #{_oppaware_forward_jit.1} parent=1 // pred_fallthru
      _
    %54 = sfence
    %v55 = vld [vmem:[%s1] sm:$0x1]
    %v56 = vld [vmem:[%s6] sm:$0x1]
    %v57 = vld [vmem:[%s7] sm:$0xff]
    %v58 = vld [vmem:[%s7 + $0x8] sm:$0xff]
    %v59 = vld [vmem:[%s7 + $0x10] sm:$0xff]
    %v60 = vld [vmem:[%s7 + $0x18] sm:$0xff]
    %vm61 = vcmask 261120
    %v63 = vsel %vm61, %v55, 0
    %65 = vmatprep.subr.mxu0 0.0
    %66 = vmatpush1.msra.mxu0 0.0
    %67 = vmatprep.subr.mxu0 0.0
    %68 = vmatpush1.msra.mxu0 0.0
    %69 = vmatprep.subr.mxu0 0.0
    %70 = vmatpush1.msra.mxu0 0.0
    %71 = vmatprep.subr.mxu0 0.0
    %72 = vmatpush1.msra.mxu0 0.0
    %73 = vmatprep.subr.mxu0 0.0
    %74 = vmatpush1.msra.mxu0 0.0
    %75 = vmatprep.subr.mxu0 0.0
    %76 = vmatpush1.msra.mxu0 0.0
    %77 = vmatprep.subr.mxu0 0.0
    %78 = vmatpush1.msra.mxu0 0.0
    %79 = vmatprep.subr.mxu0 0.0
    %80 = vmatpush1.msra.mxu0 0.0
    %81 = vmatprep.subr.mxu0 0.0
    %82 = vmatpush1.msra.mxu0 0.0
    %83 = vmatprep.subr.mxu0 0.0
    %84 = vmatpush1.msra.mxu0 0.0
    %85 = vmatprep.subr.mxu0 0.0
    %86 = vmatpush1.msra.mxu0 0.0
    %87 = vmatprep.subr.mxu0 0.0
    %88 = vmatpush1.msra.mxu0 0.0
    %89 = vmatprep.subr.mxu0 0.0
    %90 = vmatpush1.msra.mxu0 %v60
    %91 = vmatprep.subr.mxu0 0.0
    %92 = vmatpush1.msra.mxu0 %v59
    %93 = vmatprep.subr.mxu0 0.0
    %94 = vmatpush1.msra.mxu0 %v58
    %95 = vmatprep.subr.mxu0 0.0
    %96 = vmatpush1.msra.mxu0 %v57
    %97 = vmatprep.subr.mxu0 0.0
    %98 = vmatpush2.msra.mxu0 0.0
    %99 = vmatprep.subr.mxu0 0.0
    %100 = vmatpush2.msra.mxu0 0.0
    %101 = vmatprep.subr.mxu0 0.0
    %102 = vmatpush2.msra.mxu0 0.0
    %103 = vmatprep.subr.mxu0 0.0
    %104 = vmatpush2.msra.mxu0 0.0
    %105 = vmatprep.subr.mxu0 0.0
    %106 = vmatpush2.msra.mxu0 0.0
    %107 = vmatprep.subr.mxu0 0.0
    %108 = vmatpush2.msra.mxu0 0.0
    %109 = vmatprep.subr.mxu0 0.0
    %110 = vmatpush2.msra.mxu0 0.0
    %111 = vmatprep.subr.mxu0 0.0
    %112 = vmatpush2.msra.mxu0 0.0
    %113 = vmatprep.subr.mxu0 0.0
    %114 = vmatpush2.msra.mxu0 0.0
    %115 = vmatprep.subr.mxu0 0.0
    %116 = vmatpush2.msra.mxu0 0.0
    %117 = vmatprep.subr.mxu0 0.0
    %118 = vmatpush2.msra.mxu0 0.0
    %119 = vmatprep.subr.mxu0 0.0
    %120 = vmatpush2.msra.mxu0 0.0
    %121 = vmatprep.subr.mxu0 0.0
    %122 = vmatpush2.msra.mxu0 0.0
    %123 = vmatprep.subr.mxu0 0.0
    %124 = vmatpush2.msra.mxu0 0.0
    %125 = vmatprep.subr.mxu0 0.0
    %126 = vmatpush2.msra.mxu0 0.0
    %127 = vmatprep.subr.mxu0 0.0
    %128 = vmatpush2.msra.mxu0 0.0
    %129 = vmatprep.mubr.f32.mxu0 0.0
    %130 = vmatmul.mubr.f32.gmra.mxu0 %v63
    %v131 = vpop.f32.mrf.mxu0
    %v132 = vadd.f32 0.0, %v131
    %v133 = vpop.f32.mrf.mxu0
    %134 = vdwg.mxu0
    %v135 = vadd.f32 %v56, %v132
    %v136 = vld [vmem:[%s10] sm:$0x1]
    %v137 = vld [vmem:[%s11] sm:$0xff]
    %v138 = vld [vmem:[%s11 + $0x8] sm:$0xff]
    %v139 = vld [vmem:[%s11 + $0x10] sm:$0xff]
    %v140 = vld [vmem:[%s11 + $0x18] sm:$0xff]
    %141 = vmatprep.subr.mxu0 0.0
    %142 = vmatpush1.msra.mxu0 0.0
    %143 = vmatprep.subr.mxu0 0.0
    %144 = vmatpush1.msra.mxu0 0.0
    %145 = vmatprep.subr.mxu0 0.0
    %146 = vmatpush1.msra.mxu0 0.0
    %147 = vmatprep.subr.mxu0 0.0
    %148 = vmatpush1.msra.mxu0 0.0
    %149 = vmatprep.subr.mxu0 0.0
    %150 = vmatpush1.msra.mxu0 0.0
    %151 = vmatprep.subr.mxu0 0.0
    %152 = vmatpush1.msra.mxu0 0.0
    %153 = vmatprep.subr.mxu0 0.0
    %154 = vmatpush1.msra.mxu0 0.0
    %155 = vmatprep.subr.mxu0 0.0
    %156 = vmatpush1.msra.mxu0 0.0
    %157 = vmatprep.subr.mxu0 0.0
    %158 = vmatpush1.msra.mxu0 0.0
    %159 = vmatprep.subr.mxu0 0.0
    %160 = vmatpush1.msra.mxu0 0.0
    %161 = vmatprep.subr.mxu0 0.0
    %162 = vmatpush1.msra.mxu0 0.0
    %163 = vmatprep.subr.mxu0 0.0
    %164 = vmatpush1.msra.mxu0 0.0
    %165 = vmatprep.subr.mxu0 0.0
    %166 = vmatpush1.msra.mxu0 %v140
    %167 = vmatprep.subr.mxu0 0.0
    %168 = vmatpush1.msra.mxu0 %v139
    %169 = vmatprep.subr.mxu0 0.0
    %170 = vmatpush1.msra.mxu0 %v138
    %171 = vmatprep.subr.mxu0 0.0
    %172 = vmatpush1.msra.mxu0 %v137
    %173 = vmatprep.subr.mxu0 0.0
    %174 = vmatpush2.msra.mxu0 0.0
    %175 = vmatprep.subr.mxu0 0.0
    %176 = vmatpush2.msra.mxu0 0.0
    %177 = vmatprep.subr.mxu0 0.0
    %178 = vmatpush2.msra.mxu0 0.0
    %179 = vmatprep.subr.mxu0 0.0
    %180 = vmatpush2.msra.mxu0 0.0
    %181 = vmatprep.subr.mxu0 0.0
    %182 = vmatpush2.msra.mxu0 0.0
    %183 = vmatprep.subr.mxu0 0.0
    %184 = vmatpush2.msra.mxu0 0.0
    %185 = vmatprep.subr.mxu0 0.0
    %186 = vmatpush2.msra.mxu0 0.0
    %187 = vmatprep.subr.mxu0 0.0
    %188 = vmatpush2.msra.mxu0 0.0
    %189 = vmatprep.subr.mxu0 0.0
    %190 = vmatpush2.msra.mxu0 0.0
    %191 = vmatprep.subr.mxu0 0.0
    %192 = vmatpush2.msra.mxu0 0.0
    %193 = vmatprep.subr.mxu0 0.0
    %194 = vmatpush2.msra.mxu0 0.0
    %195 = vmatprep.subr.mxu0 0.0
    %196 = vmatpush2.msra.mxu0 0.0
    %197 = vmatprep.subr.mxu0 0.0
    %198 = vmatpush2.msra.mxu0 0.0
    %199 = vmatprep.subr.mxu0 0.0
    %200 = vmatpush2.msra.mxu0 0.0
    %201 = vmatprep.subr.mxu0 0.0
    %202 = vmatpush2.msra.mxu0 0.0
    %203 = vmatprep.subr.mxu0 0.0
    %204 = vmatpush2.msra.mxu0 0.0
    %205 = vmatprep.mubr.f32.mxu0 0.0
    %206 = vmatmul.mubr.f32.gmra.mxu0 %v63
    %v207 = vpop.f32.mrf.mxu0
    %v208 = vadd.f32 0.0, %v207
    %v209 = vpop.f32.mrf.mxu0
    %210 = vdwg.mxu0
    %v211 = vadd.f32 %v136, %v208
    %v212 = vld [vmem:[%s2] sm:$0xff]
    %v213 = vld [vmem:[%s4] sm:$0xff]
    %v214 = vld [vmem:[%s4 + $0x8] sm:$0xff]
    %v215 = vld [vmem:[%s4 + $0x10] sm:$0xff]
    %v216 = vld [vmem:[%s4 + $0x18] sm:$0xff]
    %v217 = vld [vmem:[%s3] sm:$0xff]
    %v218 = vld [vmem:[%s3 + $0x8] sm:$0xff]
    %v219 = vld [vmem:[%s3 + $0x10] sm:$0xff]
    %v220 = vld [vmem:[%s3 + $0x18] sm:$0xff]
    %v221 = vld [vmem:[%s3 + $0x20] sm:$0xff]
    %v222 = vld [vmem:[%s3 + $0x28] sm:$0xff]
    %v223 = vld [vmem:[%s3 + $0x30] sm:$0xff]
    %v224 = vld [vmem:[%s3 + $0x38] sm:$0xff]
    %v225 = vld [vmem:[%s5] sm:$0xff]
    %v226 = vld [vmem:[%s5 + $0x8] sm:$0xff]
    %v227 = vld [vmem:[%s5 + $0x10] sm:$0xff]
    %v228 = vld [vmem:[%s5 + $0x18] sm:$0xff]
    %v229 = vld [vmem:[%s5 + $0x20] sm:$0xff]
    %v230 = vld [vmem:[%s5 + $0x28] sm:$0xff]
    %v231 = vld [vmem:[%s5 + $0x30] sm:$0xff]
    %v232 = vld [vmem:[%s5 + $0x38] sm:$0xff]
    %v233 = vld [vmem:[%s5 + $0x40] sm:$0xff]
    %v234 = vld [vmem:[%s5 + $0x48] sm:$0xff]
    %v235 = vld [vmem:[%s5 + $0x50] sm:$0xff]
    %v236 = vld [vmem:[%s5 + $0x58] sm:$0xff]
    %v237 = vld [vmem:[%s5 + $0x60] sm:$0xff]
    %v238 = vld [vmem:[%s5 + $0x68] sm:$0xff]
    %v239 = vld [vmem:[%s5 + $0x70] sm:$0xff]
    %v240 = vld [vmem:[%s5 + $0x78] sm:$0xff]
    %v241 = vld [vmem:[%s5 + $0x80] sm:$0xff]
    %v242 = vld [vmem:[%s5 + $0x88] sm:$0xff]
    %v243 = vld [vmem:[%s5 + $0x90] sm:$0xff]
    %v244 = vld [vmem:[%s5 + $0x98] sm:$0xff]
    %v245 = vld [vmem:[%s5 + $0xa0] sm:$0xff]
    %v246 = vld [vmem:[%s5 + $0xa8] sm:$0xff]
    %v247 = vld [vmem:[%s5 + $0xb0] sm:$0xff]
    %v248 = vld [vmem:[%s5 + $0xb8] sm:$0xff]
    %v249 = vld [vmem:[%s5 + $0xc0] sm:$0xff]
    %v250 = vld [vmem:[%s5 + $0xc8] sm:$0xff]
    %v251 = vld [vmem:[%s5 + $0xd0] sm:$0xff]
    %v252 = vld [vmem:[%s5 + $0xd8] sm:$0xff]
    %v253 = vld [vmem:[%s5 + $0xe0] sm:$0xff]
    %v254 = vld [vmem:[%s5 + $0xe8] sm:$0xff]
    %v255 = vld [vmem:[%s5 + $0xf0] sm:$0xff]
    %v256 = vld [vmem:[%s5 + $0xf8] sm:$0xff]
    %v257 = vld [vmem:[%s5 + $0x100] sm:$0xff]
    %v258 = vld [vmem:[%s5 + $0x108] sm:$0xff]
    %v259 = vld [vmem:[%s5 + $0x110] sm:$0xff]
    %v260 = vld [vmem:[%s5 + $0x118] sm:$0xff]
    %v261 = vld [vmem:[%s5 + $0x120] sm:$0xff]
    %v262 = vld [vmem:[%s5 + $0x128] sm:$0xff]
    %v263 = vld [vmem:[%s5 + $0x130] sm:$0xff]
    %v264 = vld [vmem:[%s5 + $0x138] sm:$0xff]
    %v265 = vld [vmem:[%s5 + $0x140] sm:$0xff]
    %v266 = vld [vmem:[%s5 + $0x148] sm:$0xff]
    %v267 = vld [vmem:[%s5 + $0x150] sm:$0xff]
    %v268 = vld [vmem:[%s5 + $0x158] sm:$0xff]
    %v269 = vld [vmem:[%s5 + $0x160] sm:$0xff]
    %v270 = vld [vmem:[%s5 + $0x168] sm:$0xff]
    %v271 = vld [vmem:[%s5 + $0x170] sm:$0xff]
    %v272 = vld [vmem:[%s5 + $0x178] sm:$0xff]
    %v273 = vld [vmem:[%s5 + $0x180] sm:$0xff]
    %v274 = vld [vmem:[%s5 + $0x188] sm:$0xff]
    %v275 = vld [vmem:[%s5 + $0x190] sm:$0xff]
    %v276 = vld [vmem:[%s5 + $0x198] sm:$0xff]
    %v277 = vld [vmem:[%s5 + $0x1a0] sm:$0xff]
    %v278 = vld [vmem:[%s5 + $0x1a8] sm:$0xff]
    %v279 = vld [vmem:[%s5 + $0x1b0] sm:$0xff]
    %v280 = vld [vmem:[%s5 + $0x1b8] sm:$0xff]
    %v281 = vld [vmem:[%s5 + $0x1c0] sm:$0xff]
    %v282 = vld [vmem:[%s5 + $0x1c8] sm:$0xff]
    %v283 = vld [vmem:[%s5 + $0x1d0] sm:$0xff]
    %v284 = vld [vmem:[%s5 + $0x1d8] sm:$0xff]
    %v285 = vld [vmem:[%s5 + $0x1e0] sm:$0xff]
    %v286 = vld [vmem:[%s5 + $0x1e8] sm:$0xff]
    %v287 = vld [vmem:[%s5 + $0x1f0] sm:$0xff]
    %v288 = vld [vmem:[%s5 + $0x1f8] sm:$0xff]
    %v289 = vld [vmem:[%s5 + $0x200] sm:$0xff]
    %v290 = vld [vmem:[%s5 + $0x208] sm:$0xff]
    %v291 = vld [vmem:[%s5 + $0x210] sm:$0xff]
    %v292 = vld [vmem:[%s5 + $0x218] sm:$0xff]
    %v293 = vld [vmem:[%s5 + $0x220] sm:$0xff]
    %v294 = vld [vmem:[%s5 + $0x228] sm:$0xff]
    %v295 = vld [vmem:[%s5 + $0x230] sm:$0xff]
    %v296 = vld [vmem:[%s5 + $0x238] sm:$0xff]
    %v297 = vld [vmem:[%s5 + $0x240] sm:$0xff]
    %v298 = vld [vmem:[%s5 + $0x248] sm:$0xff]
    %v299 = vld [vmem:[%s5 + $0x250] sm:$0xff]
    %v300 = vld [vmem:[%s5 + $0x258] sm:$0xff]
    %v301 = vld [vmem:[%s5 + $0x260] sm:$0xff]
    %v302 = vld [vmem:[%s5 + $0x268] sm:$0xff]
    %v303 = vld [vmem:[%s5 + $0x270] sm:$0xff]
    %v304 = vld [vmem:[%s5 + $0x278] sm:$0xff]
    %v305 = vld [vmem:[%s5 + $0x280] sm:$0xff]
    %v306 = vld [vmem:[%s5 + $0x288] sm:$0xff]
    %v307 = vld [vmem:[%s5 + $0x290] sm:$0xff]
    %v308 = vld [vmem:[%s5 + $0x298] sm:$0xff]
    %v309 = vld [vmem:[%s5 + $0x2a0] sm:$0xff]
    %v310 = vld [vmem:[%s5 + $0x2a8] sm:$0xff]
    %v311 = vld [vmem:[%s5 + $0x2b0] sm:$0xff]
    %v312 = vld [vmem:[%s5 + $0x2b8] sm:$0xff]
    %v313 = vld [vmem:[%s5 + $0x2c0] sm:$0xff]
    %v314 = vld [vmem:[%s5 + $0x2c8] sm:$0xff]
    %v315 = vld [vmem:[%s5 + $0x2d0] sm:$0xff]
    %v316 = vld [vmem:[%s5 + $0x2d8] sm:$0xff]
    %v317 = vld [vmem:[%s5 + $0x2e0] sm:$0xff]
    %v318 = vld [vmem:[%s5 + $0x2e8] sm:$0xff]
    %v319 = vld [vmem:[%s5 + $0x2f0] sm:$0xff]
    %v320 = vld [vmem:[%s5 + $0x2f8] sm:$0xff]
    %v321 = vld [vmem:[%s5 + $0x300] sm:$0xff]
    %v322 = vld [vmem:[%s5 + $0x308] sm:$0xff]
    %v323 = vld [vmem:[%s5 + $0x310] sm:$0xff]
    %v324 = vld [vmem:[%s5 + $0x318] sm:$0xff]
    %v325 = vld [vmem:[%s5 + $0x320] sm:$0xff]
    %v326 = vld [vmem:[%s5 + $0x328] sm:$0xff]
    %v327 = vld [vmem:[%s5 + $0x330] sm:$0xff]
    %v328 = vld [vmem:[%s5 + $0x338] sm:$0xff]
    %v329 = vld [vmem:[%s5 + $0x340] sm:$0xff]
    %v330 = vld [vmem:[%s5 + $0x348] sm:$0xff]
    %v331 = vld [vmem:[%s5 + $0x350] sm:$0xff]
    %v332 = vld [vmem:[%s5 + $0x358] sm:$0xff]
    %v333 = vld [vmem:[%s5 + $0x360] sm:$0xff]
    %v334 = vld [vmem:[%s5 + $0x368] sm:$0xff]
    %v335 = vld [vmem:[%s5 + $0x370] sm:$0xff]
    %v336 = vld [vmem:[%s5 + $0x378] sm:$0xff]
    %v337 = vld [vmem:[%s5 + $0x380] sm:$0xff]
    %v338 = vld [vmem:[%s5 + $0x388] sm:$0xff]
    %v339 = vld [vmem:[%s5 + $0x390] sm:$0xff]
    %v340 = vld [vmem:[%s5 + $0x398] sm:$0xff]
    %v341 = vld [vmem:[%s5 + $0x3a0] sm:$0xff]
    %v342 = vld [vmem:[%s5 + $0x3a8] sm:$0xff]
    %v343 = vld [vmem:[%s5 + $0x3b0] sm:$0xff]
    %v344 = vld [vmem:[%s5 + $0x3b8] sm:$0xff]
    %v345 = vld [vmem:[%s5 + $0x3c0] sm:$0xff]
    %v346 = vld [vmem:[%s5 + $0x3c8] sm:$0xff]
    %v347 = vld [vmem:[%s5 + $0x3d0] sm:$0xff]
    %v348 = vld [vmem:[%s5 + $0x3d8] sm:$0xff]
    %v349 = vld [vmem:[%s5 + $0x3e0] sm:$0xff]
    %v350 = vld [vmem:[%s5 + $0x3e8] sm:$0xff]
    %v351 = vld [vmem:[%s5 + $0x3f0] sm:$0xff]
    %v352 = vld [vmem:[%s5 + $0x3f8] sm:$0xff]
    %353 = vmatprep.subr.mxu0 0.0
    %354 = vmatpush1.msra.mxu0 %v240
    %355 = vmatprep.subr.mxu0 0.0
    %356 = vmatpush1.msra.mxu0 %v239
    %357 = vmatprep.subr.mxu0 0.0
    %358 = vmatpush1.msra.mxu0 %v238
    %359 = vmatprep.subr.mxu0 0.0
    %360 = vmatpush1.msra.mxu0 %v237
    %361 = vmatprep.subr.mxu0 0.0
    %362 = vmatpush1.msra.mxu0 %v236
    %363 = vmatprep.subr.mxu0 0.0
    %364 = vmatpush1.msra.mxu0 %v235
    %365 = vmatprep.subr.mxu0 0.0
    %366 = vmatpush1.msra.mxu0 %v234
    %367 = vmatprep.subr.mxu0 0.0
    %368 = vmatpush1.msra.mxu0 %v233
    %369 = vmatprep.subr.mxu0 0.0
    %370 = vmatpush1.msra.mxu0 %v232
    %371 = vmatprep.subr.mxu0 0.0
    %372 = vmatpush1.msra.mxu0 %v231
    %373 = vmatprep.subr.mxu0 0.0
    %374 = vmatpush1.msra.mxu0 %v230
    %375 = vmatprep.subr.mxu0 0.0
    %376 = vmatpush1.msra.mxu0 %v229
    %377 = vmatprep.subr.mxu0 0.0
    %378 = vmatpush1.msra.mxu0 %v228
    %379 = vmatprep.subr.mxu0 0.0
    %380 = vmatpush1.msra.mxu0 %v227
    %381 = vmatprep.subr.mxu0 0.0
    %382 = vmatpush1.msra.mxu0 %v226
    %383 = vmatprep.subr.mxu0 0.0
    %384 = vmatpush1.msra.mxu0 %v225
    %385 = vmatprep.subr.mxu0 0.0
    %386 = vmatpush2.msra.mxu0 %v256
    %387 = vmatprep.subr.mxu0 0.0
    %388 = vmatpush2.msra.mxu0 %v255
    %389 = vmatprep.subr.mxu0 0.0
    %390 = vmatpush2.msra.mxu0 %v254
    %391 = vmatprep.subr.mxu0 0.0
    %392 = vmatpush2.msra.mxu0 %v253
    %393 = vmatprep.subr.mxu0 0.0
    %394 = vmatpush2.msra.mxu0 %v252
    %395 = vmatprep.subr.mxu0 0.0
    %396 = vmatpush2.msra.mxu0 %v251
    %397 = vmatprep.subr.mxu0 0.0
    %398 = vmatpush2.msra.mxu0 %v250
    %399 = vmatprep.subr.mxu0 0.0
    %400 = vmatpush2.msra.mxu0 %v249
    %401 = vmatprep.subr.mxu0 0.0
    %402 = vmatpush2.msra.mxu0 %v248
    %403 = vmatprep.subr.mxu0 0.0
    %404 = vmatpush2.msra.mxu0 %v247
    %405 = vmatprep.subr.mxu0 0.0
    %406 = vmatpush2.msra.mxu0 %v246
    %407 = vmatprep.subr.mxu0 0.0
    %408 = vmatpush2.msra.mxu0 %v245
    %409 = vmatprep.subr.mxu0 0.0
    %410 = vmatpush2.msra.mxu0 %v244
    %411 = vmatprep.subr.mxu0 0.0
    %412 = vmatpush2.msra.mxu0 %v243
    %413 = vmatprep.subr.mxu0 0.0
    %414 = vmatpush2.msra.mxu0 %v242
    %415 = vmatprep.subr.mxu0 0.0
    %416 = vmatpush2.msra.mxu0 %v241
    %417 = vmatprep.mubr.f32.mxu0 %v218
    %418 = vmatmul.mubr.f32.gmra.mxu0 %v217
    %v419 = vpop.f32.mrf.mxu0
    %v420 = vadd.f32 0.0, %v419
    %v421 = vpop.f32.mrf.mxu0
    %422 = vdwg.mxu0
    %423 = vmatprep.subr.mxu0 0.0
    %424 = vmatpush1.msra.mxu0 %v272
    %425 = vmatprep.subr.mxu0 0.0
    %426 = vmatpush1.msra.mxu0 %v271
    %427 = vmatprep.subr.mxu0 0.0
    %428 = vmatpush1.msra.mxu0 %v270
    %429 = vmatprep.subr.mxu0 0.0
    %430 = vmatpush1.msra.mxu0 %v269
    %431 = vmatprep.subr.mxu0 0.0
    %432 = vmatpush1.msra.mxu0 %v268
    %433 = vmatprep.subr.mxu0 0.0
    %434 = vmatpush1.msra.mxu0 %v267
    %435 = vmatprep.subr.mxu0 0.0
    %436 = vmatpush1.msra.mxu0 %v266
    %437 = vmatprep.subr.mxu0 0.0
    %438 = vmatpush1.msra.mxu0 %v265
    %439 = vmatprep.subr.mxu0 0.0
    %440 = vmatpush1.msra.mxu0 %v264
    %441 = vmatprep.subr.mxu0 0.0
    %442 = vmatpush1.msra.mxu0 %v263
    %443 = vmatprep.subr.mxu0 0.0
    %444 = vmatpush1.msra.mxu0 %v262
    %445 = vmatprep.subr.mxu0 0.0
    %446 = vmatpush1.msra.mxu0 %v261
    %447 = vmatprep.subr.mxu0 0.0
    %448 = vmatpush1.msra.mxu0 %v260
    %449 = vmatprep.subr.mxu0 0.0
    %450 = vmatpush1.msra.mxu0 %v259
    %451 = vmatprep.subr.mxu0 0.0
    %452 = vmatpush1.msra.mxu0 %v258
    %453 = vmatprep.subr.mxu0 0.0
    %454 = vmatpush1.msra.mxu0 %v257
    %455 = vmatprep.subr.mxu0 0.0
    %456 = vmatpush2.msra.mxu0 %v288
    %457 = vmatprep.subr.mxu0 0.0
    %458 = vmatpush2.msra.mxu0 %v287
    %459 = vmatprep.subr.mxu0 0.0
    %460 = vmatpush2.msra.mxu0 %v286
    %461 = vmatprep.subr.mxu0 0.0
    %462 = vmatpush2.msra.mxu0 %v285
    %463 = vmatprep.subr.mxu0 0.0
    %464 = vmatpush2.msra.mxu0 %v284
    %465 = vmatprep.subr.mxu0 0.0
    %466 = vmatpush2.msra.mxu0 %v283
    %467 = vmatprep.subr.mxu0 0.0
    %468 = vmatpush2.msra.mxu0 %v282
    %469 = vmatprep.subr.mxu0 0.0
    %470 = vmatpush2.msra.mxu0 %v281
    %471 = vmatprep.subr.mxu0 0.0
    %472 = vmatpush2.msra.mxu0 %v280
    %473 = vmatprep.subr.mxu0 0.0
    %474 = vmatpush2.msra.mxu0 %v279
    %475 = vmatprep.subr.mxu0 0.0
    %476 = vmatpush2.msra.mxu0 %v278
    %477 = vmatprep.subr.mxu0 0.0
    %478 = vmatpush2.msra.mxu0 %v277
    %479 = vmatprep.subr.mxu0 0.0
    %480 = vmatpush2.msra.mxu0 %v276
    %481 = vmatprep.subr.mxu0 0.0
    %482 = vmatpush2.msra.mxu0 %v275
    %483 = vmatprep.subr.mxu0 0.0
    %484 = vmatpush2.msra.mxu0 %v274
    %485 = vmatprep.subr.mxu0 0.0
    %486 = vmatpush2.msra.mxu0 %v273
    %487 = vmatprep.mubr.f32.mxu0 %v220
    %488 = vmatmul.mubr.f32.gmra.mxu0 %v219
    %v489 = vpop.f32.mrf.mxu0
    %v490 = vadd.f32 %v420, %v489
    %v491 = vpop.f32.mrf.mxu0
    %492 = vdwg.mxu0
    %493 = vmatprep.subr.mxu0 0.0
    %494 = vmatpush1.msra.mxu0 %v304
    %495 = vmatprep.subr.mxu0 0.0
    %496 = vmatpush1.msra.mxu0 %v303
    %497 = vmatprep.subr.mxu0 0.0
    %498 = vmatpush1.msra.mxu0 %v302
    %499 = vmatprep.subr.mxu0 0.0
    %500 = vmatpush1.msra.mxu0 %v301
    %501 = vmatprep.subr.mxu0 0.0
    %502 = vmatpush1.msra.mxu0 %v300
    %503 = vmatprep.subr.mxu0 0.0
    %504 = vmatpush1.msra.mxu0 %v299
    %505 = vmatprep.subr.mxu0 0.0
    %506 = vmatpush1.msra.mxu0 %v298
    %507 = vmatprep.subr.mxu0 0.0
    %508 = vmatpush1.msra.mxu0 %v297
    %509 = vmatprep.subr.mxu0 0.0
    %510 = vmatpush1.msra.mxu0 %v296
    %511 = vmatprep.subr.mxu0 0.0
    %512 = vmatpush1.msra.mxu0 %v295
    %513 = vmatprep.subr.mxu0 0.0
    %514 = vmatpush1.msra.mxu0 %v294
    %515 = vmatprep.subr.mxu0 0.0
    %516 = vmatpush1.msra.mxu0 %v293
    %517 = vmatprep.subr.mxu0 0.0
    %518 = vmatpush1.msra.mxu0 %v292
    %519 = vmatprep.subr.mxu0 0.0
    %520 = vmatpush1.msra.mxu0 %v291
    %521 = vmatprep.subr.mxu0 0.0
    %522 = vmatpush1.msra.mxu0 %v290
    %523 = vmatprep.subr.mxu0 0.0
    %524 = vmatpush1.msra.mxu0 %v289
    %525 = vmatprep.subr.mxu0 0.0
    %526 = vmatpush2.msra.mxu0 %v320
    %527 = vmatprep.subr.mxu0 0.0
    %528 = vmatpush2.msra.mxu0 %v319
    %529 = vmatprep.subr.mxu0 0.0
    %530 = vmatpush2.msra.mxu0 %v318
    %531 = vmatprep.subr.mxu0 0.0
    %532 = vmatpush2.msra.mxu0 %v317
    %533 = vmatprep.subr.mxu0 0.0
    %534 = vmatpush2.msra.mxu0 %v316
    %535 = vmatprep.subr.mxu0 0.0
    %536 = vmatpush2.msra.mxu0 %v315
    %537 = vmatprep.subr.mxu0 0.0
    %538 = vmatpush2.msra.mxu0 %v314
    %539 = vmatprep.subr.mxu0 0.0
    %540 = vmatpush2.msra.mxu0 %v313
    %541 = vmatprep.subr.mxu0 0.0
    %542 = vmatpush2.msra.mxu0 %v312
    %543 = vmatprep.subr.mxu0 0.0
    %544 = vmatpush2.msra.mxu0 %v311
    %545 = vmatprep.subr.mxu0 0.0
    %546 = vmatpush2.msra.mxu0 %v310
    %547 = vmatprep.subr.mxu0 0.0
    %548 = vmatpush2.msra.mxu0 %v309
    %549 = vmatprep.subr.mxu0 0.0
    %550 = vmatpush2.msra.mxu0 %v308
    %551 = vmatprep.subr.mxu0 0.0
    %552 = vmatpush2.msra.mxu0 %v307
    %553 = vmatprep.subr.mxu0 0.0
    %554 = vmatpush2.msra.mxu0 %v306
    %555 = vmatprep.subr.mxu0 0.0
    %556 = vmatpush2.msra.mxu0 %v305
    %557 = vmatprep.mubr.f32.mxu0 %v222
    %558 = vmatmul.mubr.f32.gmra.mxu0 %v221
    %v559 = vpop.f32.mrf.mxu0
    %v560 = vadd.f32 %v490, %v559
    %v561 = vpop.f32.mrf.mxu0
    %562 = vdwg.mxu0
    %563 = vmatprep.subr.mxu0 0.0
    %564 = vmatpush1.msra.mxu0 %v336
    %565 = vmatprep.subr.mxu0 0.0
    %566 = vmatpush1.msra.mxu0 %v335
    %567 = vmatprep.subr.mxu0 0.0
    %568 = vmatpush1.msra.mxu0 %v334
    %569 = vmatprep.subr.mxu0 0.0
    %570 = vmatpush1.msra.mxu0 %v333
    %571 = vmatprep.subr.mxu0 0.0
    %572 = vmatpush1.msra.mxu0 %v332
    %573 = vmatprep.subr.mxu0 0.0
    %574 = vmatpush1.msra.mxu0 %v331
    %575 = vmatprep.subr.mxu0 0.0
    %576 = vmatpush1.msra.mxu0 %v330
    %577 = vmatprep.subr.mxu0 0.0
    %578 = vmatpush1.msra.mxu0 %v329
    %579 = vmatprep.subr.mxu0 0.0
    %580 = vmatpush1.msra.mxu0 %v328
    %581 = vmatprep.subr.mxu0 0.0
    %582 = vmatpush1.msra.mxu0 %v327
    %583 = vmatprep.subr.mxu0 0.0
    %584 = vmatpush1.msra.mxu0 %v326
    %585 = vmatprep.subr.mxu0 0.0
    %586 = vmatpush1.msra.mxu0 %v325
    %587 = vmatprep.subr.mxu0 0.0
    %588 = vmatpush1.msra.mxu0 %v324
    %589 = vmatprep.subr.mxu0 0.0
    %590 = vmatpush1.msra.mxu0 %v323
    %591 = vmatprep.subr.mxu0 0.0
    %592 = vmatpush1.msra.mxu0 %v322
    %593 = vmatprep.subr.mxu0 0.0
    %594 = vmatpush1.msra.mxu0 %v321
    %595 = vmatprep.subr.mxu0 0.0
    %596 = vmatpush2.msra.mxu0 %v352
    %597 = vmatprep.subr.mxu0 0.0
    %598 = vmatpush2.msra.mxu0 %v351
    %599 = vmatprep.subr.mxu0 0.0
    %600 = vmatpush2.msra.mxu0 %v350
    %601 = vmatprep.subr.mxu0 0.0
    %602 = vmatpush2.msra.mxu0 %v349
    %603 = vmatprep.subr.mxu0 0.0
    %604 = vmatpush2.msra.mxu0 %v348
    %605 = vmatprep.subr.mxu0 0.0
    %606 = vmatpush2.msra.mxu0 %v347
    %607 = vmatprep.subr.mxu0 0.0
    %608 = vmatpush2.msra.mxu0 %v346
    %609 = vmatprep.subr.mxu0 0.0
    %610 = vmatpush2.msra.mxu0 %v345
    %611 = vmatprep.subr.mxu0 0.0
    %612 = vmatpush2.msra.mxu0 %v344
    %613 = vmatprep.subr.mxu0 0.0
    %614 = vmatpush2.msra.mxu0 %v343
    %615 = vmatprep.subr.mxu0 0.0
    %616 = vmatpush2.msra.mxu0 %v342
    %617 = vmatprep.subr.mxu0 0.0
    %618 = vmatpush2.msra.mxu0 %v341
    %619 = vmatprep.subr.mxu0 0.0
    %620 = vmatpush2.msra.mxu0 %v340
    %621 = vmatprep.subr.mxu0 0.0
    %622 = vmatpush2.msra.mxu0 %v339
    %623 = vmatprep.subr.mxu0 0.0
    %624 = vmatpush2.msra.mxu0 %v338
    %625 = vmatprep.subr.mxu0 0.0
    %626 = vmatpush2.msra.mxu0 %v337
    %627 = vmatprep.mubr.f32.mxu0 %v224
    %628 = vmatmul.mubr.f32.gmra.mxu0 %v223
    %v629 = vpop.f32.mrf.mxu0
    %v630 = vadd.f32 %v560, %v629
    %v631 = vpop.f32.mrf.mxu0
    %632 = vdwg.mxu0
    %v634 = vsel %vm61, %v212, 0
    %636 = vmatprep.subr.mxu0 0.0
    %637 = vmatpush1.msra.mxu0 0.0
    %638 = vmatprep.subr.mxu0 0.0
    %639 = vmatpush1.msra.mxu0 0.0
    %640 = vmatprep.subr.mxu0 0.0
    %641 = vmatpush1.msra.mxu0 0.0
    %642 = vmatprep.subr.mxu0 0.0
    %643 = vmatpush1.msra.mxu0 0.0
    %644 = vmatprep.subr.mxu0 0.0
    %645 = vmatpush1.msra.mxu0 0.0
    %646 = vmatprep.subr.mxu0 0.0
    %647 = vmatpush1.msra.mxu0 0.0
    %648 = vmatprep.subr.mxu0 0.0
    %649 = vmatpush1.msra.mxu0 0.0
    %650 = vmatprep.subr.mxu0 0.0
    %651 = vmatpush1.msra.mxu0 0.0
    %652 = vmatprep.subr.mxu0 0.0
    %653 = vmatpush1.msra.mxu0 0.0
    %654 = vmatprep.subr.mxu0 0.0
    %655 = vmatpush1.msra.mxu0 0.0
    %656 = vmatprep.subr.mxu0 0.0
    %657 = vmatpush1.msra.mxu0 0.0
    %658 = vmatprep.subr.mxu0 0.0
    %659 = vmatpush1.msra.mxu0 0.0
    %660 = vmatprep.subr.mxu0 0.0
    %661 = vmatpush1.msra.mxu0 %v216
    %662 = vmatprep.subr.mxu0 0.0
    %663 = vmatpush1.msra.mxu0 %v215
    %664 = vmatprep.subr.mxu0 0.0
    %665 = vmatpush1.msra.mxu0 %v214
    %666 = vmatprep.subr.mxu0 0.0
    %667 = vmatpush1.msra.mxu0 %v213
    %668 = vmatprep.subr.mxu0 0.0
    %669 = vmatpush2.msra.mxu0 0.0
    %670 = vmatprep.subr.mxu0 0.0
    %671 = vmatpush2.msra.mxu0 0.0
    %672 = vmatprep.subr.mxu0 0.0
    %673 = vmatpush2.msra.mxu0 0.0
    %674 = vmatprep.subr.mxu0 0.0
    %675 = vmatpush2.msra.mxu0 0.0
    %676 = vmatprep.subr.mxu0 0.0
    %677 = vmatpush2.msra.mxu0 0.0
    %678 = vmatprep.subr.mxu0 0.0
    %679 = vmatpush2.msra.mxu0 0.0
    %680 = vmatprep.subr.mxu0 0.0
    %681 = vmatpush2.msra.mxu0 0.0
    %682 = vmatprep.subr.mxu0 0.0
    %683 = vmatpush2.msra.mxu0 0.0
    %684 = vmatprep.subr.mxu0 0.0
    %685 = vmatpush2.msra.mxu0 0.0
    %686 = vmatprep.subr.mxu0 0.0
    %687 = vmatpush2.msra.mxu0 0.0
    %688 = vmatprep.subr.mxu0 0.0
    %689 = vmatpush2.msra.mxu0 0.0
    %690 = vmatprep.subr.mxu0 0.0
    %691 = vmatpush2.msra.mxu0 0.0
    %692 = vmatprep.subr.mxu0 0.0
    %693 = vmatpush2.msra.mxu0 0.0
    %694 = vmatprep.subr.mxu0 0.0
    %695 = vmatpush2.msra.mxu0 0.0
    %696 = vmatprep.subr.mxu0 0.0
    %697 = vmatpush2.msra.mxu0 0.0
    %698 = vmatprep.subr.mxu0 0.0
    %699 = vmatpush2.msra.mxu0 0.0
    %700 = vmatprep.mubr.f32.mxu0 0.0
    %701 = vmatmul.mubr.f32.gmra.mxu0 %v634
    %v702 = vpop.f32.mrf.mxu0
    %v703 = vadd.f32 %v630, %v702
    %v704 = vpop.f32.mrf.mxu0
    %705 = vdwg.mxu0
    %v707 = vlaneseq
    %v708 = vshrl.u32 %v707, 7
    %v709 = vsub.s32 0, %v708
    %v710 = vrot.slane %v135, %v709
    %v712 = vadd.f32 %v703, %v710
    %vm713 = vcmp.ge.f32.partialorder %v712, 0.0
    %v714 = vmul.f32 %v712, 0.18181819
    %v715 = vsel %vm713, %v712, %v714
    %v716 = vld [vmem:[%s8] sm:$0xff]
    %v717 = vld [vmem:[%s8 + $0x8] sm:$0xff]
    %v718 = vld [vmem:[%s8 + $0x10] sm:$0xff]
    %v719 = vld [vmem:[%s8 + $0x18] sm:$0xff]
    %s720 = sld [smem:[#allocation2]]
    %v721 = vld [vmem:[%s9] sm:$0xff]
    %v722 = vld [vmem:[%s9 + $0x8] sm:$0xff]
    %v723 = vld [vmem:[%s9 + $0x10] sm:$0xff]
    %v724 = vld [vmem:[%s9 + $0x18] sm:$0xff]
    %v725 = vstv %s720
    %v726 = vmul.f32 %v725, %v721
    %v727 = vmul.f32 %v725, %v722
    %v728 = vmul.f32 %v725, %v723
    %v729 = vmul.f32 %v725, %v724
    %v730 = vadd.f32 %v716, %v726
    %v731 = vadd.f32 %v717, %v727
    %v732 = vadd.f32 %v718, %v728
    %v733 = vadd.f32 %v719, %v729
    %s734 = sld [smem:[#allocation2 + $0x1]]
    %s735 = scalar_lea.vmem %s9, 32
    %v736 = vld [vmem:[%s735] sm:$0xff]
    %v737 = vld [vmem:[%s735 + $0x8] sm:$0xff]
    %v738 = vld [vmem:[%s735 + $0x10] sm:$0xff]
    %v739 = vld [vmem:[%s735 + $0x18] sm:$0xff]
    %v740 = vstv %s734
    %v741 = vmul.f32 %v740, %v736
    %v742 = vmul.f32 %v740, %v737
    %v743 = vmul.f32 %v740, %v738
    %v744 = vmul.f32 %v740, %v739
    %v745 = vadd.f32 %v730, %v741
    %v746 = vadd.f32 %v731, %v742
    %v747 = vadd.f32 %v732, %v743
    %v748 = vadd.f32 %v733, %v744
    %s749 = sld [smem:[#allocation2 + $0x2]]
    %s750 = scalar_lea.vmem %s9, 64
    %v751 = vld [vmem:[%s750] sm:$0xff]
    %v752 = vld [vmem:[%s750 + $0x8] sm:$0xff]
    %v753 = vld [vmem:[%s750 + $0x10] sm:$0xff]
    %v754 = vld [vmem:[%s750 + $0x18] sm:$0xff]
    %v755 = vstv %s749
    %v756 = vmul.f32 %v755, %v751
    %v757 = vmul.f32 %v755, %v752
    %v758 = vmul.f32 %v755, %v753
    %v759 = vmul.f32 %v755, %v754
    %v760 = vadd.f32 %v745, %v756
    %v761 = vadd.f32 %v746, %v757
    %v762 = vadd.f32 %v747, %v758
    %v763 = vadd.f32 %v748, %v759
    %s764 = sld [smem:[#allocation2 + $0x3]]
    %s765 = scalar_lea.vmem %s9, 96
    %v766 = vld [vmem:[%s765] sm:$0xff]
    %v767 = vld [vmem:[%s765 + $0x8] sm:$0xff]
    %v768 = vld [vmem:[%s765 + $0x10] sm:$0xff]
    %v769 = vld [vmem:[%s765 + $0x18] sm:$0xff]
    %v770 = vstv %s764
    %v771 = vmul.f32 %v770, %v766
    %v772 = vmul.f32 %v770, %v767
    %v773 = vmul.f32 %v770, %v768
    %v774 = vmul.f32 %v770, %v769
    %v775 = vadd.f32 %v760, %v771
    %v776 = vadd.f32 %v761, %v772
    %v777 = vadd.f32 %v762, %v773
    %v778 = vadd.f32 %v763, %v774
    %s779 = sld [smem:[#allocation2 + $0x4]]
    %s780 = scalar_lea.vmem %s9, 128
    %v781 = vld [vmem:[%s780] sm:$0xff]
    %v782 = vld [vmem:[%s780 + $0x8] sm:$0xff]
    %v783 = vld [vmem:[%s780 + $0x10] sm:$0xff]
    %v784 = vld [vmem:[%s780 + $0x18] sm:$0xff]
    %v785 = vstv %s779
    %v786 = vmul.f32 %v785, %v781
    %v787 = vmul.f32 %v785, %v782
    %v788 = vmul.f32 %v785, %v783
    %v789 = vmul.f32 %v785, %v784
    %v790 = vadd.f32 %v775, %v786
    %v791 = vadd.f32 %v776, %v787
    %v792 = vadd.f32 %v777, %v788
    %v793 = vadd.f32 %v778, %v789
    %s794 = sld [smem:[#allocation2 + $0x5]]
    %s795 = scalar_lea.vmem %s9, 160
    %v796 = vld [vmem:[%s795] sm:$0xff]
    %v797 = vld [vmem:[%s795 + $0x8] sm:$0xff]
    %v798 = vld [vmem:[%s795 + $0x10] sm:$0xff]
    %v799 = vld [vmem:[%s795 + $0x18] sm:$0xff]
    %v800 = vstv %s794
    %v801 = vmul.f32 %v800, %v796
    %v802 = vmul.f32 %v800, %v797
    %v803 = vmul.f32 %v800, %v798
    %v804 = vmul.f32 %v800, %v799
    %v805 = vadd.f32 %v790, %v801
    %v806 = vadd.f32 %v791, %v802
    %v807 = vadd.f32 %v792, %v803
    %v808 = vadd.f32 %v793, %v804
    %s809 = sld [smem:[#allocation2 + $0x6]]
    %s810 = scalar_lea.vmem %s9, 192
    %v811 = vld [vmem:[%s810] sm:$0xff]
    %v812 = vld [vmem:[%s810 + $0x8] sm:$0xff]
    %v813 = vld [vmem:[%s810 + $0x10] sm:$0xff]
    %v814 = vld [vmem:[%s810 + $0x18] sm:$0xff]
    %v815 = vstv %s809
    %v816 = vmul.f32 %v815, %v811
    %v817 = vmul.f32 %v815, %v812
    %v818 = vmul.f32 %v815, %v813
    %v819 = vmul.f32 %v815, %v814
    %v820 = vadd.f32 %v805, %v816
    %v821 = vadd.f32 %v806, %v817
    %v822 = vadd.f32 %v807, %v818
    %v823 = vadd.f32 %v808, %v819
    %s824 = sld [smem:[#allocation2 + $0x7]]
    %s825 = scalar_lea.vmem %s9, 224
    %v826 = vld [vmem:[%s825] sm:$0xff]
    %v827 = vld [vmem:[%s825 + $0x8] sm:$0xff]
    %v828 = vld [vmem:[%s825 + $0x10] sm:$0xff]
    %v829 = vld [vmem:[%s825 + $0x18] sm:$0xff]
    %v830 = vstv %s824
    %v831 = vmul.f32 %v830, %v826
    %v832 = vmul.f32 %v830, %v827
    %v833 = vmul.f32 %v830, %v828
    %v834 = vmul.f32 %v830, %v829
    %v835 = vadd.f32 %v820, %v831
    %v836 = vadd.f32 %v821, %v832
    %v837 = vadd.f32 %v822, %v833
    %v838 = vadd.f32 %v823, %v834
    %s839 = sld [smem:[#allocation2 + $0x8]]
    %s840 = scalar_lea.vmem %s9, 256
    %v841 = vld [vmem:[%s840] sm:$0xff]
    %v842 = vld [vmem:[%s840 + $0x8] sm:$0xff]
    %v843 = vld [vmem:[%s840 + $0x10] sm:$0xff]
    %v844 = vld [vmem:[%s840 + $0x18] sm:$0xff]
    %v845 = vstv %s839
    %v846 = vmul.f32 %v845, %v841
    %v847 = vmul.f32 %v845, %v842
    %v848 = vmul.f32 %v845, %v843
    %v849 = vmul.f32 %v845, %v844
    %v850 = vadd.f32 %v835, %v846
    %v851 = vadd.f32 %v836, %v847
    %v852 = vadd.f32 %v837, %v848
    %v853 = vadd.f32 %v838, %v849
    %s854 = sld [smem:[#allocation2 + $0x9]]
    %s855 = scalar_lea.vmem %s9, 288
    %v856 = vld [vmem:[%s855] sm:$0xff]
    %v857 = vld [vmem:[%s855 + $0x8] sm:$0xff]
    %v858 = vld [vmem:[%s855 + $0x10] sm:$0xff]
    %v859 = vld [vmem:[%s855 + $0x18] sm:$0xff]
    %v860 = vstv %s854
    %v861 = vmul.f32 %v860, %v856
    %v862 = vmul.f32 %v860, %v857
    %v863 = vmul.f32 %v860, %v858
    %v864 = vmul.f32 %v860, %v859
    %v865 = vadd.f32 %v850, %v861
    %v866 = vadd.f32 %v851, %v862
    %v867 = vadd.f32 %v852, %v863
    %v868 = vadd.f32 %v853, %v864
    %s869 = sld [smem:[#allocation2 + $0xa]]
    %s870 = scalar_lea.vmem %s9, 320
    %v871 = vld [vmem:[%s870] sm:$0xff]
    %v872 = vld [vmem:[%s870 + $0x8] sm:$0xff]
    %v873 = vld [vmem:[%s870 + $0x10] sm:$0xff]
    %v874 = vld [vmem:[%s870 + $0x18] sm:$0xff]
    %v875 = vstv %s869
    %v876 = vmul.f32 %v875, %v871
    %v877 = vmul.f32 %v875, %v872
    %v878 = vmul.f32 %v875, %v873
    %v879 = vmul.f32 %v875, %v874
    %v880 = vadd.f32 %v865, %v876
    %v881 = vadd.f32 %v866, %v877
    %v882 = vadd.f32 %v867, %v878
    %v883 = vadd.f32 %v868, %v879
    %s884 = sld [smem:[#allocation2 + $0xb]]
    %s885 = scalar_lea.vmem %s9, 352
    %v886 = vld [vmem:[%s885] sm:$0xff]
    %v887 = vld [vmem:[%s885 + $0x8] sm:$0xff]
    %v888 = vld [vmem:[%s885 + $0x10] sm:$0xff]
    %v889 = vld [vmem:[%s885 + $0x18] sm:$0xff]
    %v890 = vstv %s884
    %v891 = vmul.f32 %v890, %v886
    %v892 = vmul.f32 %v890, %v887
    %v893 = vmul.f32 %v890, %v888
    %v894 = vmul.f32 %v890, %v889
    %v895 = vadd.f32 %v880, %v891
    %v896 = vadd.f32 %v881, %v892
    %v897 = vadd.f32 %v882, %v893
    %v898 = vadd.f32 %v883, %v894
    %s899 = sld [smem:[#allocation2 + $0xc]]
    %s900 = scalar_lea.vmem %s9, 384
    %v901 = vld [vmem:[%s900] sm:$0xff]
    %v902 = vld [vmem:[%s900 + $0x8] sm:$0xff]
    %v903 = vld [vmem:[%s900 + $0x10] sm:$0xff]
    %v904 = vld [vmem:[%s900 + $0x18] sm:$0xff]
    %v905 = vstv %s899
    %v906 = vmul.f32 %v905, %v901
    %v907 = vmul.f32 %v905, %v902
    %v908 = vmul.f32 %v905, %v903
    %v909 = vmul.f32 %v905, %v904
    %v910 = vadd.f32 %v895, %v906
    %v911 = vadd.f32 %v896, %v907
    %v912 = vadd.f32 %v897, %v908
    %v913 = vadd.f32 %v898, %v909
    %s914 = sld [smem:[#allocation2 + $0xd]]
    %s915 = scalar_lea.vmem %s9, 416
    %v916 = vld [vmem:[%s915] sm:$0xff]
    %v917 = vld [vmem:[%s915 + $0x8] sm:$0xff]
    %v918 = vld [vmem:[%s915 + $0x10] sm:$0xff]
    %v919 = vld [vmem:[%s915 + $0x18] sm:$0xff]
    %v920 = vstv %s914
    %v921 = vmul.f32 %v920, %v916
    %v922 = vmul.f32 %v920, %v917
    %v923 = vmul.f32 %v920, %v918
    %v924 = vmul.f32 %v920, %v919
    %v925 = vadd.f32 %v910, %v921
    %v926 = vadd.f32 %v911, %v922
    %v927 = vadd.f32 %v912, %v923
    %v928 = vadd.f32 %v913, %v924
    %s929 = sld [smem:[#allocation2 + $0xe]]
    %s930 = scalar_lea.vmem %s9, 448
    %v931 = vld [vmem:[%s930] sm:$0xff]
    %v932 = vld [vmem:[%s930 + $0x8] sm:$0xff]
    %v933 = vld [vmem:[%s930 + $0x10] sm:$0xff]
    %v934 = vld [vmem:[%s930 + $0x18] sm:$0xff]
    %v935 = vstv %s929
    %v936 = vmul.f32 %v935, %v931
    %v937 = vmul.f32 %v935, %v932
    %v938 = vmul.f32 %v935, %v933
    %v939 = vmul.f32 %v935, %v934
    %v940 = vadd.f32 %v925, %v936
    %v941 = vadd.f32 %v926, %v937
    %v942 = vadd.f32 %v927, %v938
    %v943 = vadd.f32 %v928, %v939
    %s944 = sld [smem:[#allocation2 + $0xf]]
    %s945 = scalar_lea.vmem %s9, 480
    %v946 = vld [vmem:[%s945] sm:$0xff]
    %v947 = vld [vmem:[%s945 + $0x8] sm:$0xff]
    %v948 = vld [vmem:[%s945 + $0x10] sm:$0xff]
    %v949 = vld [vmem:[%s945 + $0x18] sm:$0xff]
    %v950 = vstv %s944
    %v951 = vmul.f32 %v950, %v946
    %v952 = vmul.f32 %v950, %v947
    %v953 = vmul.f32 %v950, %v948
    %v954 = vmul.f32 %v950, %v949
    %v955 = vadd.f32 %v940, %v951
    %v956 = vadd.f32 %v941, %v952
    %v957 = vadd.f32 %v942, %v953
    %v958 = vadd.f32 %v943, %v954
    %s959 = sld [smem:[#allocation2 + $0x10]]
    %s960 = scalar_lea.vmem %s9, 512
    %v961 = vld [vmem:[%s960] sm:$0xff]
    %v962 = vld [vmem:[%s960 + $0x8] sm:$0xff]
    %v963 = vld [vmem:[%s960 + $0x10] sm:$0xff]
    %v964 = vld [vmem:[%s960 + $0x18] sm:$0xff]
    %v965 = vstv %s959
    %v966 = vmul.f32 %v965, %v961
    %v967 = vmul.f32 %v965, %v962
    %v968 = vmul.f32 %v965, %v963
    %v969 = vmul.f32 %v965, %v964
    %v970 = vadd.f32 %v955, %v966
    %v971 = vadd.f32 %v956, %v967
    %v972 = vadd.f32 %v957, %v968
    %v973 = vadd.f32 %v958, %v969
    %s974 = sld [smem:[#allocation2 + $0x11]]
    %s975 = scalar_lea.vmem %s9, 544
    %v976 = vld [vmem:[%s975] sm:$0xff]
    %v977 = vld [vmem:[%s975 + $0x8] sm:$0xff]
    %v978 = vld [vmem:[%s975 + $0x10] sm:$0xff]
    %v979 = vld [vmem:[%s975 + $0x18] sm:$0xff]
    %v980 = vstv %s974
    %v981 = vmul.f32 %v980, %v976
    %v982 = vmul.f32 %v980, %v977
    %v983 = vmul.f32 %v980, %v978
    %v984 = vmul.f32 %v980, %v979
    %v985 = vadd.f32 %v970, %v981
    %v986 = vadd.f32 %v971, %v982
    %v987 = vadd.f32 %v972, %v983
    %v988 = vadd.f32 %v973, %v984
    %s989 = sld [smem:[#allocation2 + $0x12]]
    %s990 = scalar_lea.vmem %s9, 576
    %v991 = vld [vmem:[%s990] sm:$0xff]
    %v992 = vld [vmem:[%s990 + $0x8] sm:$0xff]
    %v993 = vld [vmem:[%s990 + $0x10] sm:$0xff]
    %v994 = vld [vmem:[%s990 + $0x18] sm:$0xff]
    %v995 = vstv %s989
    %v996 = vmul.f32 %v995, %v991
    %v997 = vmul.f32 %v995, %v992
    %v998 = vmul.f32 %v995, %v993
    %v999 = vmul.f32 %v995, %v994
    %v1000 = vadd.f32 %v985, %v996
    %v1001 = vadd.f32 %v986, %v997
    %v1002 = vadd.f32 %v987, %v998
    %v1003 = vadd.f32 %v988, %v999
    %s1004 = sld [smem:[#allocation2 + $0x13]]
    %s1005 = scalar_lea.vmem %s9, 608
    %v1006 = vld [vmem:[%s1005] sm:$0xff]
    %v1007 = vld [vmem:[%s1005 + $0x8] sm:$0xff]
    %v1008 = vld [vmem:[%s1005 + $0x10] sm:$0xff]
    %v1009 = vld [vmem:[%s1005 + $0x18] sm:$0xff]
    %v1010 = vstv %s1004
    %v1011 = vmul.f32 %v1010, %v1006
    %v1012 = vmul.f32 %v1010, %v1007
    %v1013 = vmul.f32 %v1010, %v1008
    %v1014 = vmul.f32 %v1010, %v1009
    %v1015 = vadd.f32 %v1000, %v1011
    %v1016 = vadd.f32 %v1001, %v1012
    %v1017 = vadd.f32 %v1002, %v1013
    %v1018 = vadd.f32 %v1003, %v1014
    %s1019 = sld [smem:[#allocation2 + $0x14]]
    %s1020 = scalar_lea.vmem %s9, 640
    %v1021 = vld [vmem:[%s1020] sm:$0xff]
    %v1022 = vld [vmem:[%s1020 + $0x8] sm:$0xff]
    %v1023 = vld [vmem:[%s1020 + $0x10] sm:$0xff]
    %v1024 = vld [vmem:[%s1020 + $0x18] sm:$0xff]
    %v1025 = vstv %s1019
    %v1026 = vmul.f32 %v1025, %v1021
    %v1027 = vmul.f32 %v1025, %v1022
    %v1028 = vmul.f32 %v1025, %v1023
    %v1029 = vmul.f32 %v1025, %v1024
    %v1030 = vadd.f32 %v1015, %v1026
    %v1031 = vadd.f32 %v1016, %v1027
    %v1032 = vadd.f32 %v1017, %v1028
    %v1033 = vadd.f32 %v1018, %v1029
    %s1034 = sld [smem:[#allocation2 + $0x15]]
    %s1035 = scalar_lea.vmem %s9, 672
    %v1036 = vld [vmem:[%s1035] sm:$0xff]
    %v1037 = vld [vmem:[%s1035 + $0x8] sm:$0xff]
    %v1038 = vld [vmem:[%s1035 + $0x10] sm:$0xff]
    %v1039 = vld [vmem:[%s1035 + $0x18] sm:$0xff]
    %v1040 = vstv %s1034
    %v1041 = vmul.f32 %v1040, %v1036
    %v1042 = vmul.f32 %v1040, %v1037
    %v1043 = vmul.f32 %v1040, %v1038
    %v1044 = vmul.f32 %v1040, %v1039
    %v1045 = vadd.f32 %v1030, %v1041
    %v1046 = vadd.f32 %v1031, %v1042
    %v1047 = vadd.f32 %v1032, %v1043
    %v1048 = vadd.f32 %v1033, %v1044
    %s1049 = sld [smem:[#allocation2 + $0x16]]
    %s1050 = scalar_lea.vmem %s9, 704
    %v1051 = vld [vmem:[%s1050] sm:$0xff]
    %v1052 = vld [vmem:[%s1050 + $0x8] sm:$0xff]
    %v1053 = vld [vmem:[%s1050 + $0x10] sm:$0xff]
    %v1054 = vld [vmem:[%s1050 + $0x18] sm:$0xff]
    %v1055 = vstv %s1049
    %v1056 = vmul.f32 %v1055, %v1051
    %v1057 = vmul.f32 %v1055, %v1052
    %v1058 = vmul.f32 %v1055, %v1053
    %v1059 = vmul.f32 %v1055, %v1054
    %v1060 = vadd.f32 %v1045, %v1056
    %v1061 = vadd.f32 %v1046, %v1057
    %v1062 = vadd.f32 %v1047, %v1058
    %v1063 = vadd.f32 %v1048, %v1059
    %s1064 = sld [smem:[#allocation2 + $0x17]]
    %s1065 = scalar_lea.vmem %s9, 736
    %v1066 = vld [vmem:[%s1065] sm:$0xff]
    %v1067 = vld [vmem:[%s1065 + $0x8] sm:$0xff]
    %v1068 = vld [vmem:[%s1065 + $0x10] sm:$0xff]
    %v1069 = vld [vmem:[%s1065 + $0x18] sm:$0xff]
    %v1070 = vstv %s1064
    %v1071 = vmul.f32 %v1070, %v1066
    %v1072 = vmul.f32 %v1070, %v1067
    %v1073 = vmul.f32 %v1070, %v1068
    %v1074 = vmul.f32 %v1070, %v1069
    %v1075 = vadd.f32 %v1060, %v1071
    %v1076 = vadd.f32 %v1061, %v1072
    %v1077 = vadd.f32 %v1062, %v1073
    %v1078 = vadd.f32 %v1063, %v1074
    %s1079 = sld [smem:[#allocation2 + $0x18]]
    %s1080 = scalar_lea.vmem %s9, 768
    %v1081 = vld [vmem:[%s1080] sm:$0xff]
    %v1082 = vld [vmem:[%s1080 + $0x8] sm:$0xff]
    %v1083 = vld [vmem:[%s1080 + $0x10] sm:$0xff]
    %v1084 = vld [vmem:[%s1080 + $0x18] sm:$0xff]
    %v1085 = vstv %s1079
    %v1086 = vmul.f32 %v1085, %v1081
    %v1087 = vmul.f32 %v1085, %v1082
    %v1088 = vmul.f32 %v1085, %v1083
    %v1089 = vmul.f32 %v1085, %v1084
    %v1090 = vadd.f32 %v1075, %v1086
    %v1091 = vadd.f32 %v1076, %v1087
    %v1092 = vadd.f32 %v1077, %v1088
    %v1093 = vadd.f32 %v1078, %v1089
    %s1094 = sld [smem:[#allocation2 + $0x19]]
    %s1095 = scalar_lea.vmem %s9, 800
    %v1096 = vld [vmem:[%s1095] sm:$0xff]
    %v1097 = vld [vmem:[%s1095 + $0x8] sm:$0xff]
    %v1098 = vld [vmem:[%s1095 + $0x10] sm:$0xff]
    %v1099 = vld [vmem:[%s1095 + $0x18] sm:$0xff]
    %v1100 = vstv %s1094
    %v1101 = vmul.f32 %v1100, %v1096
    %v1102 = vmul.f32 %v1100, %v1097
    %v1103 = vmul.f32 %v1100, %v1098
    %v1104 = vmul.f32 %v1100, %v1099
    %v1105 = vadd.f32 %v1090, %v1101
    %v1106 = vadd.f32 %v1091, %v1102
    %v1107 = vadd.f32 %v1092, %v1103
    %v1108 = vadd.f32 %v1093, %v1104
    %s1109 = sld [smem:[#allocation2 + $0x1a]]
    %s1110 = scalar_lea.vmem %s9, 832
    %v1111 = vld [vmem:[%s1110] sm:$0xff]
    %v1112 = vld [vmem:[%s1110 + $0x8] sm:$0xff]
    %v1113 = vld [vmem:[%s1110 + $0x10] sm:$0xff]
    %v1114 = vld [vmem:[%s1110 + $0x18] sm:$0xff]
    %v1115 = vstv %s1109
    %v1116 = vmul.f32 %v1115, %v1111
    %v1117 = vmul.f32 %v1115, %v1112
    %v1118 = vmul.f32 %v1115, %v1113
    %v1119 = vmul.f32 %v1115, %v1114
    %v1120 = vadd.f32 %v1105, %v1116
    %v1121 = vadd.f32 %v1106, %v1117
    %v1122 = vadd.f32 %v1107, %v1118
    %v1123 = vadd.f32 %v1108, %v1119
    %s1124 = sld [smem:[#allocation2 + $0x1b]]
    %s1125 = scalar_lea.vmem %s9, 864
    %v1126 = vld [vmem:[%s1125] sm:$0xff]
    %v1127 = vld [vmem:[%s1125 + $0x8] sm:$0xff]
    %v1128 = vld [vmem:[%s1125 + $0x10] sm:$0xff]
    %v1129 = vld [vmem:[%s1125 + $0x18] sm:$0xff]
    %v1130 = vstv %s1124
    %v1131 = vmul.f32 %v1130, %v1126
    %v1132 = vmul.f32 %v1130, %v1127
    %v1133 = vmul.f32 %v1130, %v1128
    %v1134 = vmul.f32 %v1130, %v1129
    %v1135 = vadd.f32 %v1120, %v1131
    %v1136 = vadd.f32 %v1121, %v1132
    %v1137 = vadd.f32 %v1122, %v1133
    %v1138 = vadd.f32 %v1123, %v1134
    %s1139 = sld [smem:[#allocation2 + $0x1c]]
    %s1140 = scalar_lea.vmem %s9, 896
    %v1141 = vld [vmem:[%s1140] sm:$0xff]
    %v1142 = vld [vmem:[%s1140 + $0x8] sm:$0xff]
    %v1143 = vld [vmem:[%s1140 + $0x10] sm:$0xff]
    %v1144 = vld [vmem:[%s1140 + $0x18] sm:$0xff]
    %v1145 = vstv %s1139
    %v1146 = vmul.f32 %v1145, %v1141
    %v1147 = vmul.f32 %v1145, %v1142
    %v1148 = vmul.f32 %v1145, %v1143
    %v1149 = vmul.f32 %v1145, %v1144
    %v1150 = vadd.f32 %v1135, %v1146
    %v1151 = vadd.f32 %v1136, %v1147
    %v1152 = vadd.f32 %v1137, %v1148
    %v1153 = vadd.f32 %v1138, %v1149
    %s1154 = sld [smem:[#allocation2 + $0x1d]]
    %s1155 = scalar_lea.vmem %s9, 928
    %v1156 = vld [vmem:[%s1155] sm:$0xff]
    %v1157 = vld [vmem:[%s1155 + $0x8] sm:$0xff]
    %v1158 = vld [vmem:[%s1155 + $0x10] sm:$0xff]
    %v1159 = vld [vmem:[%s1155 + $0x18] sm:$0xff]
    %v1160 = vstv %s1154
    %v1161 = vmul.f32 %v1160, %v1156
    %v1162 = vmul.f32 %v1160, %v1157
    %v1163 = vmul.f32 %v1160, %v1158
    %v1164 = vmul.f32 %v1160, %v1159
    %v1165 = vadd.f32 %v1150, %v1161
    %v1166 = vadd.f32 %v1151, %v1162
    %v1167 = vadd.f32 %v1152, %v1163
    %v1168 = vadd.f32 %v1153, %v1164
    %s1169 = sld [smem:[#allocation2 + $0x1e]]
    %s1170 = scalar_lea.vmem %s9, 960
    %v1171 = vld [vmem:[%s1170] sm:$0xff]
    %v1172 = vld [vmem:[%s1170 + $0x8] sm:$0xff]
    %v1173 = vld [vmem:[%s1170 + $0x10] sm:$0xff]
    %v1174 = vld [vmem:[%s1170 + $0x18] sm:$0xff]
    %v1175 = vstv %s1169
    %v1176 = vmul.f32 %v1175, %v1171
    %v1177 = vmul.f32 %v1175, %v1172
    %v1178 = vmul.f32 %v1175, %v1173
    %v1179 = vmul.f32 %v1175, %v1174
    %v1180 = vadd.f32 %v1165, %v1176
    %v1181 = vadd.f32 %v1166, %v1177
    %v1182 = vadd.f32 %v1167, %v1178
    %v1183 = vadd.f32 %v1168, %v1179
    %s1184 = sld [smem:[#allocation2 + $0x1f]]
    %s1185 = scalar_lea.vmem %s9, 992
    %v1186 = vld [vmem:[%s1185] sm:$0xff]
    %v1187 = vld [vmem:[%s1185 + $0x8] sm:$0xff]
    %v1188 = vld [vmem:[%s1185 + $0x10] sm:$0xff]
    %v1189 = vld [vmem:[%s1185 + $0x18] sm:$0xff]
    %v1190 = vstv %s1184
    %v1191 = vmul.f32 %v1190, %v1186
    %v1192 = vmul.f32 %v1190, %v1187
    %v1193 = vmul.f32 %v1190, %v1188
    %v1194 = vmul.f32 %v1190, %v1189
    %v1195 = vadd.f32 %v1180, %v1191
    %v1196 = vadd.f32 %v1181, %v1192
    %v1197 = vadd.f32 %v1182, %v1193
    %v1198 = vadd.f32 %v1183, %v1194
    %v1200 = vlaneseq
    %v1201 = vshrl.u32 %v1200, 7
    %v1202 = vsub.s32 0, %v1201
    %v1203 = vrot.slane %v211, %v1202
    %vm1205 = vcmask 523264
    %v1207 = vsel %vm1205, %v715, 0
    %v1210 = vsel %vm1205, %v1195, 0
    %v1213 = vsel %vm1205, %v1196, 0
    %v1216 = vsel %vm1205, %v1197, 0
    %v1219 = vsel %vm1205, %v1198, 0
    %1221 = vmatprep.subr.mxu0 0.0
    %1222 = vmatpush1.xpose.msra.mxu0 0.0
    %1223 = vmatprep.subr.mxu0 0.0
    %1224 = vmatpush1.xpose.msra.mxu0 0.0
    %1225 = vmatprep.subr.mxu0 0.0
    %1226 = vmatpush1.xpose.msra.mxu0 0.0
    %1227 = vmatprep.subr.mxu0 0.0
    %1228 = vmatpush1.xpose.msra.mxu0 0.0
    %1229 = vmatprep.subr.mxu0 0.0
    %1230 = vmatpush1.xpose.msra.mxu0 0.0
    %1231 = vmatprep.subr.mxu0 0.0
    %1232 = vmatpush1.xpose.msra.mxu0 0.0
    %1233 = vmatprep.subr.mxu0 0.0
    %1234 = vmatpush1.xpose.msra.mxu0 0.0
    %1235 = vmatprep.subr.mxu0 0.0
    %1236 = vmatpush1.xpose.msra.mxu0 0.0
    %1237 = vmatprep.subr.mxu0 0.0
    %1238 = vmatpush1.xpose.msra.mxu0 0.0
    %1239 = vmatprep.subr.mxu0 0.0
    %1240 = vmatpush1.xpose.msra.mxu0 0.0
    %1241 = vmatprep.subr.mxu0 0.0
    %1242 = vmatpush1.xpose.msra.mxu0 0.0
    %1243 = vmatprep.subr.mxu0 0.0
    %1244 = vmatpush1.xpose.msra.mxu0 0.0
    %1245 = vmatprep.subr.mxu0 0.0
    %1246 = vmatpush1.xpose.msra.mxu0 %v1219
    %1247 = vmatprep.subr.mxu0 0.0
    %1248 = vmatpush1.xpose.msra.mxu0 %v1216
    %1249 = vmatprep.subr.mxu0 0.0
    %1250 = vmatpush1.xpose.msra.mxu0 %v1213
    %1251 = vmatprep.subr.mxu0 0.0
    %1252 = vmatpush1.xpose.msra.mxu0 %v1210
    %1253 = vmatprep.subr.mxu0 0.0
    %1254 = vmatpush2.xpose.msra.mxu0 0.0
    %1255 = vmatprep.subr.mxu0 0.0
    %1256 = vmatpush2.xpose.msra.mxu0 0.0
    %1257 = vmatprep.subr.mxu0 0.0
    %1258 = vmatpush2.xpose.msra.mxu0 0.0
    %1259 = vmatprep.subr.mxu0 0.0
    %1260 = vmatpush2.xpose.msra.mxu0 0.0
    %1261 = vmatprep.subr.mxu0 0.0
    %1262 = vmatpush2.xpose.msra.mxu0 0.0
    %1263 = vmatprep.subr.mxu0 0.0
    %1264 = vmatpush2.xpose.msra.mxu0 0.0
    %1265 = vmatprep.subr.mxu0 0.0
    %1266 = vmatpush2.xpose.msra.mxu0 0.0
    %1267 = vmatprep.subr.mxu0 0.0
    %1268 = vmatpush2.xpose.msra.mxu0 0.0
    %1269 = vmatprep.subr.mxu0 0.0
    %1270 = vmatpush2.xpose.msra.mxu0 0.0
    %1271 = vmatprep.subr.mxu0 0.0
    %1272 = vmatpush2.xpose.msra.mxu0 0.0
    %1273 = vmatprep.subr.mxu0 0.0
    %1274 = vmatpush2.xpose.msra.mxu0 0.0
    %1275 = vmatprep.subr.mxu0 0.0
    %1276 = vmatpush2.xpose.msra.mxu0 0.0
    %1277 = vmatprep.subr.mxu0 0.0
    %1278 = vmatpush2.xpose.msra.mxu0 0.0
    %1279 = vmatprep.subr.mxu0 0.0
    %1280 = vmatpush2.xpose.msra.mxu0 0.0
    %1281 = vmatprep.subr.mxu0 0.0
    %1282 = vmatpush2.xpose.msra.mxu0 0.0
    %1283 = vmatprep.subr.mxu0 0.0
    %1284 = vmatpush2.xpose.msra.mxu0 0.0
    %1285 = vmatprep.mubr.f32.mxu0 0.0
    %1286 = vmatmul.mubr.f32.gmra.mxu0 %v1207
    %v1287 = vpop.f32.mrf.mxu0
    %v1288 = vadd.f32 %v1203, %v1287
    %v1289 = vpop.f32.mrf.mxu0
    %1290 = vdwg.mxu0
    %1291 = vst.msk [vmem:[#allocation5] sm:$0xff] %vm61, %v1288
    // Predicated region
    $region54: #{_oppaware_forward_jit.1} parent=1 // pred_check
      _
    $region55: #{_oppaware_forward_jit.1} parent=1 // pred_check_branch
      %1293 = sbr.rel (0) target = $region57
    $region56: #{_oppaware_forward_jit.1} parent=1 // pred_region
      %s1295 = ssub.s32 128, 128
      %1296 = vsyncadd [#allocation3], %s1295
      %s1298 = sshll.u32 [#allocation5], 4
      %s1299 = int_to_ptr.vmem [resolvable:$true] %s1298
      %1301 = dma.vmem_to_hbm [thread:$0]  %s1299, 128, %s12, [#allocation3]
    $region57: #{_oppaware_forward_jit.1} parent=1 // pred_fallthru
      _
    // Predicated region
    $region58: #{_oppaware_forward_jit.1} parent=1 // pred_check
      _
    $region59: #{_oppaware_forward_jit.1} parent=1 // pred_check_branch
      %1303 = sbr.rel (0) target = $region61
    $region60: #{_oppaware_forward_jit.1} parent=1 // pred_region
      %1304 = dma.done [#allocation3], 128
    $region61: #{_oppaware_forward_jit.1} parent=1 // pred_fallthru
      _
    %1305 = vsyncpa [#allocation3], 1
    %1306 = vsyncpa [#allocation4], 1

</llo_original>
